<compile_context>
chip_gen: v7x
topology: tpu7x:2x2x1
jax: 0.10.0
libtpu: 0.0.40
codegen_flags: <defaults>
</compile_context>

<pallas_src>
import jax
import jax.numpy as jnp
from jax import lax
from jax.experimental import pallas as pl
from jax.experimental.pallas import tpu as pltpu

_BN_EPS = 1e-5
_MXU_INPUT_DTYPE = jnp.float32   # set to jnp.bfloat16 on v5e if matmul-bound


# ---------------------------------------------------------------------------
# Fused kernel: whole AE forward in one pallas_call
# ---------------------------------------------------------------------------

def _make_ae_kernel(layer_meta, B, n_input, n_z3, out_w):
    """layer_meta: tuple of (use_bn, use_relu, is_z3) per layer (static)."""

    def kernel(*refs):
        x_ref = refs[0]
        o_ref = refs[-1]
        prefs = refs[1:-1]

        h = x_ref[...]                               # (B, n_input) f32
        z3 = None
        i = 0
        for use_bn, use_relu, is_z3 in layer_meta:   # unrolled at trace time
            w = prefs[i][...]                        # (F_in, F_out)
            b = prefs[i + 1][...]                    # (1, F_out)
            i += 2
            y = jnp.dot(h.astype(_MXU_INPUT_DTYPE),
                        w.astype(_MXU_INPUT_DTYPE),
                        preferred_element_type=jnp.float32) + b

            if use_bn:
                gamma = prefs[i][...]                # (1, F_out)
                beta = prefs[i + 1][...]             # (1, F_out)
                i += 2
                # Training-mode BN: batch mean / biased variance over axis 0,
                # with the affine folded into a single (1, N) scale.
                mean = jnp.mean(y, axis=0, keepdims=True)
                centered = y - mean
                var = jnp.mean(centered * centered, axis=0, keepdims=True)
                scale = lax.rsqrt(var + _BN_EPS) * gamma
                y = centered * scale + beta          # one mul + one add / element

            if use_relu:
                y = jnp.maximum(y, 0.0)

            h = y
            if is_z3:
                z3 = h

        # Pack x_bar (= final h) and z3 into one lane-dense output slab.
        parts = [h, z3]
        pad = out_w - (n_input + n_z3)
        if pad > 0:
            parts.append(jnp.zeros((B, pad), jnp.float32))
        o_ref[...] = jnp.concatenate(parts, axis=1).astype(o_ref.dtype)

    return kernel


def ae_forward(params, x):
    """Fused AE forward. Returns (x_bar, z3) exactly as AE.forward does."""
    B, n_input = x.shape
    n_z3 = next(p["w"].shape[1] for p in params if p["name"] == "z3")
    out_w = ((n_input + n_z3 + 127) // 128) * 128    # lane-dense output slab

    inputs = [x]
    layer_meta = []
    for p in params:
        inputs.append(p["w"])
        inputs.append(p["b"])
        if p["use_bn"]:
            inputs.append(p["gamma"])
            inputs.append(p["beta"])
        layer_meta.append((p["use_bn"], p["use_relu"], p["name"] == "z3"))

    kernel = _make_ae_kernel(tuple(layer_meta), B, n_input, n_z3, out_w)

    out = pl.pallas_call(
        kernel,
        out_shape=jax.ShapeDtypeStruct((B, out_w), jnp.float32),
        in_specs=[pl.BlockSpec(memory_space=pltpu.MemorySpace.VMEM)] * len(inputs),
        out_specs=pl.BlockSpec(memory_space=pltpu.MemorySpace.VMEM),
    )(*inputs)

    x_bar = out[:, :n_input]
    z3 = out[:, n_input:n_input + n_z3]
    return x_bar, z3


# ---------------------------------------------------------------------------
# Parameter construction (deterministic, mirrors PyTorch nn.Linear init shapes)
# ---------------------------------------------------------------------------

def _init_linear(key, n_in, n_out):
    """PyTorch-style U(-1/sqrt(fan_in), 1/sqrt(fan_in)); W stored as (in, out)."""
    kw, kb = jax.random.split(key)
    bound = 1.0 / jnp.sqrt(jnp.float32(n_in))
    w = jax.random.uniform(kw, (n_in, n_out), jnp.float32, -bound, bound)
    b = jax.random.uniform(kb, (1, n_out), jnp.float32, -bound, bound)
    return w, b


def _init_bn(n):
    return jnp.ones((1, n), jnp.float32), jnp.zeros((1, n), jnp.float32)


def make_ae_params(key, n_enc_1, n_enc_2, n_enc_3, n_dec_1, n_dec_2, n_dec_3,
                   n_input, n_z1, n_z2, n_z3):
    dims = [
        ("enc_1", n_input, n_enc_1, True,  True),
        ("enc_2", n_enc_1, n_enc_2, True,  True),
        ("enc_3", n_enc_2, n_enc_3, True,  True),
        ("z1",    n_enc_3, n_z1,    True,  False),
        ("z2",    n_z1,    n_z2,    True,  False),
        ("z3",    n_z2,    n_z3,    True,  False),
        ("dec_1", n_z3,    n_dec_1, True,  True),
        ("dec_2", n_dec_1, n_dec_2, True,  True),
        ("dec_3", n_dec_2, n_dec_3, True,  True),
        ("x_bar", n_dec_3, n_input, False, True),   # no BN on x_bar_layer
    ]
    keys = jax.random.split(key, len(dims))
    params = []
    for k, (name, n_in, n_out, use_bn, use_relu) in zip(keys, dims):
        w, b = _init_linear(k, n_in, n_out)
        entry = dict(name=name, w=w, b=b, use_bn=use_bn, use_relu=use_relu)
        if use_bn:
            gamma, beta = _init_bn(n_out)
            entry["gamma"], entry["beta"] = gamma, beta
        params.append(entry)
    return params


# ---------------------------------------------------------------------------
# Pure-JAX reference (for sanity checking the fused kernel)
# ---------------------------------------------------------------------------

def ae_forward_ref(params, x):
    h = x
    z3 = None
    for p in params:
        y = h @ p["w"] + p["b"]
        if p["use_bn"]:
            mean = jnp.mean(y, axis=0, keepdims=True)
            var = jnp.mean((y - mean) ** 2, axis=0, keepdims=True)
            y = (y - mean) * lax.rsqrt(var + _BN_EPS) * p["gamma"] + p["beta"]
        if p["use_relu"]:
            y = jnp.maximum(y, 0.0)
        h = y
        if p["name"] == "z3":
            z3 = h
    return h, z3


if __name__ == "__main__":
    # Small, AE-consistent sizes.
    B = 8
    n_input = 32
    n_enc_1, n_enc_2, n_enc_3 = 64, 64, 32
    n_dec_1, n_dec_2, n_dec_3 = 32, 64, 64
    n_z1, n_z2, n_z3 = 32, 32, 16

    key = jax.random.PRNGKey(0)
    kp, kx = jax.random.split(key)
    params = make_ae_params(kp, n_enc_1, n_enc_2, n_enc_3,
                            n_dec_1, n_dec_2, n_dec_3,
                            n_input, n_z1, n_z2, n_z3)
    x = jax.random.normal(kx, (B, n_input), jnp.float32)

    x_bar, z3 = ae_forward(params, x)
    x_bar = jax.block_until_ready(x_bar)
    z3 = jax.block_until_ready(z3)

    # Sanity check against pure-JAX reference.
    x_bar_ref, z3_ref = ae_forward_ref(params, x)
    assert x_bar.shape == (B, n_input) and z3.shape == (B, n_z3)
    assert jnp.allclose(x_bar, x_bar_ref, atol=1e-4, rtol=1e-4)
    assert jnp.allclose(z3, z3_ref, atol=1e-4, rtol=1e-4)

    print("KERNEL_OK")
</pallas_src>

<mosaic_0001>
module attributes {stable_mosaic.version = 11 : i64} {
  func.func @kernel(%arg0: memref<8x32xf32, #tpu.memory_space<vmem>>, %arg1: memref<32x64xf32, #tpu.memory_space<vmem>>, %arg2: memref<1x64xf32, #tpu.memory_space<vmem>>, %arg3: memref<1x64xf32, #tpu.memory_space<vmem>>, %arg4: memref<1x64xf32, #tpu.memory_space<vmem>>, %arg5: memref<64x64xf32, #tpu.memory_space<vmem>>, %arg6: memref<1x64xf32, #tpu.memory_space<vmem>>, %arg7: memref<1x64xf32, #tpu.memory_space<vmem>>, %arg8: memref<1x64xf32, #tpu.memory_space<vmem>>, %arg9: memref<64x32xf32, #tpu.memory_space<vmem>>, %arg10: memref<1x32xf32, #tpu.memory_space<vmem>>, %arg11: memref<1x32xf32, #tpu.memory_space<vmem>>, %arg12: memref<1x32xf32, #tpu.memory_space<vmem>>, %arg13: memref<32x32xf32, #tpu.memory_space<vmem>>, %arg14: memref<1x32xf32, #tpu.memory_space<vmem>>, %arg15: memref<1x32xf32, #tpu.memory_space<vmem>>, %arg16: memref<1x32xf32, #tpu.memory_space<vmem>>, %arg17: memref<32x32xf32, #tpu.memory_space<vmem>>, %arg18: memref<1x32xf32, #tpu.memory_space<vmem>>, %arg19: memref<1x32xf32, #tpu.memory_space<vmem>>, %arg20: memref<1x32xf32, #tpu.memory_space<vmem>>, %arg21: memref<32x16xf32, #tpu.memory_space<vmem>>, %arg22: memref<1x16xf32, #tpu.memory_space<vmem>>, %arg23: memref<1x16xf32, #tpu.memory_space<vmem>>, %arg24: memref<1x16xf32, #tpu.memory_space<vmem>>, %arg25: memref<16x32xf32, #tpu.memory_space<vmem>>, %arg26: memref<1x32xf32, #tpu.memory_space<vmem>>, %arg27: memref<1x32xf32, #tpu.memory_space<vmem>>, %arg28: memref<1x32xf32, #tpu.memory_space<vmem>>, %arg29: memref<32x64xf32, #tpu.memory_space<vmem>>, %arg30: memref<1x64xf32, #tpu.memory_space<vmem>>, %arg31: memref<1x64xf32, #tpu.memory_space<vmem>>, %arg32: memref<1x64xf32, #tpu.memory_space<vmem>>, %arg33: memref<64x64xf32, #tpu.memory_space<vmem>>, %arg34: memref<1x64xf32, #tpu.memory_space<vmem>>, %arg35: memref<1x64xf32, #tpu.memory_space<vmem>>, %arg36: memref<1x64xf32, #tpu.memory_space<vmem>>, %arg37: memref<64x32xf32, #tpu.memory_space<vmem>>, %arg38: memref<1x32xf32, #tpu.memory_space<vmem>>, %arg39: memref<8x128xf32, #tpu.memory_space<vmem>>) attributes {dimension_semantics = [], scalar_prefetch = 0 : i64, scratch_operands = 0 : i64, tpu.core_type = #tpu.core_type<tc>} {
    %c0 = arith.constant 0 : index
    %c0_0 = arith.constant 0 : index
    %0 = vector.load %arg0[%c0, %c0_0] : memref<8x32xf32, #tpu.memory_space<vmem>>, vector<8x32xf32>
    %c0_1 = arith.constant 0 : index
    %c0_2 = arith.constant 0 : index
    %1 = vector.load %arg1[%c0_1, %c0_2] : memref<32x64xf32, #tpu.memory_space<vmem>>, vector<32x64xf32>
    %c0_3 = arith.constant 0 : index
    %c0_4 = arith.constant 0 : index
    %2 = vector.load %arg2[%c0_3, %c0_4] : memref<1x64xf32, #tpu.memory_space<vmem>>, vector<1x64xf32>
    %cst = arith.constant dense<0.000000e+00> : vector<8x64xf32>
    %3 = tpu.matmul %0, %1, %cst {dimension_numbers = #tpu.dot_dimension_numbers<[1], [0], [0], [1], [0, 0, 1, 1], [], []>} : vector<8x32xf32>, vector<32x64xf32>, vector<8x64xf32> -> vector<8x64xf32>
    %4 = vector.broadcast %2 : vector<1x64xf32> to vector<8x64xf32>
    %5 = arith.addf %3, %4 : vector<8x64xf32>
    %c0_5 = arith.constant 0 : index
    %c0_6 = arith.constant 0 : index
    %6 = vector.load %arg3[%c0_5, %c0_6] : memref<1x64xf32, #tpu.memory_space<vmem>>, vector<1x64xf32>
    %c0_7 = arith.constant 0 : index
    %c0_8 = arith.constant 0 : index
    %7 = vector.load %arg4[%c0_7, %c0_8] : memref<1x64xf32, #tpu.memory_space<vmem>>, vector<1x64xf32>
    %cst_9 = arith.constant dense<0.000000e+00> : vector<64xf32>
    %8 = vector.multi_reduction <add>, %5, %cst_9 [0] : vector<8x64xf32> to vector<64xf32>
    %9 = vector.shape_cast %8 : vector<64xf32> to vector<1x64xf32>
    %cst_10 = arith.constant 8.000000e+00 : f32
    %10 = vector.broadcast %cst_10 : f32 to vector<1x64xf32>
    %11 = arith.divf %9, %10 : vector<1x64xf32>
    %12 = vector.broadcast %11 : vector<1x64xf32> to vector<8x64xf32>
    %13 = arith.subf %5, %12 : vector<8x64xf32>
    %14 = arith.mulf %13, %13 : vector<8x64xf32>
    %cst_11 = arith.constant dense<0.000000e+00> : vector<64xf32>
    %15 = vector.multi_reduction <add>, %14, %cst_11 [0] : vector<8x64xf32> to vector<64xf32>
    %16 = vector.shape_cast %15 : vector<64xf32> to vector<1x64xf32>
    %cst_12 = arith.constant 8.000000e+00 : f32
    %17 = vector.broadcast %cst_12 : f32 to vector<1x64xf32>
    %18 = arith.divf %16, %17 : vector<1x64xf32>
    %cst_13 = arith.constant 9.99999974E-6 : f32
    %19 = vector.broadcast %cst_13 : f32 to vector<1x64xf32>
    %20 = arith.addf %18, %19 : vector<1x64xf32>
    %21 = math.rsqrt %20 : vector<1x64xf32>
    %22 = arith.mulf %21, %6 : vector<1x64xf32>
    %23 = vector.broadcast %22 : vector<1x64xf32> to vector<8x64xf32>
    %24 = arith.mulf %13, %23 : vector<8x64xf32>
    %25 = vector.broadcast %7 : vector<1x64xf32> to vector<8x64xf32>
    %26 = arith.addf %24, %25 : vector<8x64xf32>
    %cst_14 = arith.constant 0.000000e+00 : f32
    %27 = vector.broadcast %cst_14 : f32 to vector<8x64xf32>
    %28 = arith.maximumf %26, %27 : vector<8x64xf32>
    %c0_15 = arith.constant 0 : index
    %c0_16 = arith.constant 0 : index
    %29 = vector.load %arg5[%c0_15, %c0_16] : memref<64x64xf32, #tpu.memory_space<vmem>>, vector<64x64xf32>
    %c0_17 = arith.constant 0 : index
    %c0_18 = arith.constant 0 : index
    %30 = vector.load %arg6[%c0_17, %c0_18] : memref<1x64xf32, #tpu.memory_space<vmem>>, vector<1x64xf32>
    %cst_19 = arith.constant dense<0.000000e+00> : vector<8x64xf32>
    %31 = tpu.matmul %28, %29, %cst_19 {dimension_numbers = #tpu.dot_dimension_numbers<[1], [0], [0], [1], [0, 0, 1, 1], [], []>} : vector<8x64xf32>, vector<64x64xf32>, vector<8x64xf32> -> vector<8x64xf32>
    %32 = vector.broadcast %30 : vector<1x64xf32> to vector<8x64xf32>
    %33 = arith.addf %31, %32 : vector<8x64xf32>
    %c0_20 = arith.constant 0 : index
    %c0_21 = arith.constant 0 : index
    %34 = vector.load %arg7[%c0_20, %c0_21] : memref<1x64xf32, #tpu.memory_space<vmem>>, vector<1x64xf32>
    %c0_22 = arith.constant 0 : index
    %c0_23 = arith.constant 0 : index
    %35 = vector.load %arg8[%c0_22, %c0_23] : memref<1x64xf32, #tpu.memory_space<vmem>>, vector<1x64xf32>
    %cst_24 = arith.constant dense<0.000000e+00> : vector<64xf32>
    %36 = vector.multi_reduction <add>, %33, %cst_24 [0] : vector<8x64xf32> to vector<64xf32>
    %37 = vector.shape_cast %36 : vector<64xf32> to vector<1x64xf32>
    %cst_25 = arith.constant 8.000000e+00 : f32
    %38 = vector.broadcast %cst_25 : f32 to vector<1x64xf32>
    %39 = arith.divf %37, %38 : vector<1x64xf32>
    %40 = vector.broadcast %39 : vector<1x64xf32> to vector<8x64xf32>
    %41 = arith.subf %33, %40 : vector<8x64xf32>
    %42 = arith.mulf %41, %41 : vector<8x64xf32>
    %cst_26 = arith.constant dense<0.000000e+00> : vector<64xf32>
    %43 = vector.multi_reduction <add>, %42, %cst_26 [0] : vector<8x64xf32> to vector<64xf32>
    %44 = vector.shape_cast %43 : vector<64xf32> to vector<1x64xf32>
    %cst_27 = arith.constant 8.000000e+00 : f32
    %45 = vector.broadcast %cst_27 : f32 to vector<1x64xf32>
    %46 = arith.divf %44, %45 : vector<1x64xf32>
    %cst_28 = arith.constant 9.99999974E-6 : f32
    %47 = vector.broadcast %cst_28 : f32 to vector<1x64xf32>
    %48 = arith.addf %46, %47 : vector<1x64xf32>
    %49 = math.rsqrt %48 : vector<1x64xf32>
    %50 = arith.mulf %49, %34 : vector<1x64xf32>
    %51 = vector.broadcast %50 : vector<1x64xf32> to vector<8x64xf32>
    %52 = arith.mulf %41, %51 : vector<8x64xf32>
    %53 = vector.broadcast %35 : vector<1x64xf32> to vector<8x64xf32>
    %54 = arith.addf %52, %53 : vector<8x64xf32>
    %cst_29 = arith.constant 0.000000e+00 : f32
    %55 = vector.broadcast %cst_29 : f32 to vector<8x64xf32>
    %56 = arith.maximumf %54, %55 : vector<8x64xf32>
    %c0_30 = arith.constant 0 : index
    %c0_31 = arith.constant 0 : index
    %57 = vector.load %arg9[%c0_30, %c0_31] : memref<64x32xf32, #tpu.memory_space<vmem>>, vector<64x32xf32>
    %c0_32 = arith.constant 0 : index
    %c0_33 = arith.constant 0 : index
    %58 = vector.load %arg10[%c0_32, %c0_33] : memref<1x32xf32, #tpu.memory_space<vmem>>, vector<1x32xf32>
    %cst_34 = arith.constant dense<0.000000e+00> : vector<8x32xf32>
    %59 = tpu.matmul %56, %57, %cst_34 {dimension_numbers = #tpu.dot_dimension_numbers<[1], [0], [0], [1], [0, 0, 1, 1], [], []>} : vector<8x64xf32>, vector<64x32xf32>, vector<8x32xf32> -> vector<8x32xf32>
    %60 = vector.broadcast %58 : vector<1x32xf32> to vector<8x32xf32>
    %61 = arith.addf %59, %60 : vector<8x32xf32>
    %c0_35 = arith.constant 0 : index
    %c0_36 = arith.constant 0 : index
    %62 = vector.load %arg11[%c0_35, %c0_36] : memref<1x32xf32, #tpu.memory_space<vmem>>, vector<1x32xf32>
    %c0_37 = arith.constant 0 : index
    %c0_38 = arith.constant 0 : index
    %63 = vector.load %arg12[%c0_37, %c0_38] : memref<1x32xf32, #tpu.memory_space<vmem>>, vector<1x32xf32>
    %cst_39 = arith.constant dense<0.000000e+00> : vector<32xf32>
    %64 = vector.multi_reduction <add>, %61, %cst_39 [0] : vector<8x32xf32> to vector<32xf32>
    %65 = vector.shape_cast %64 : vector<32xf32> to vector<1x32xf32>
    %cst_40 = arith.constant 8.000000e+00 : f32
    %66 = vector.broadcast %cst_40 : f32 to vector<1x32xf32>
    %67 = arith.divf %65, %66 : vector<1x32xf32>
    %68 = vector.broadcast %67 : vector<1x32xf32> to vector<8x32xf32>
    %69 = arith.subf %61, %68 : vector<8x32xf32>
    %70 = arith.mulf %69, %69 : vector<8x32xf32>
    %cst_41 = arith.constant dense<0.000000e+00> : vector<32xf32>
    %71 = vector.multi_reduction <add>, %70, %cst_41 [0] : vector<8x32xf32> to vector<32xf32>
    %72 = vector.shape_cast %71 : vector<32xf32> to vector<1x32xf32>
    %cst_42 = arith.constant 8.000000e+00 : f32
    %73 = vector.broadcast %cst_42 : f32 to vector<1x32xf32>
    %74 = arith.divf %72, %73 : vector<1x32xf32>
    %cst_43 = arith.constant 9.99999974E-6 : f32
    %75 = vector.broadcast %cst_43 : f32 to vector<1x32xf32>
    %76 = arith.addf %74, %75 : vector<1x32xf32>
    %77 = math.rsqrt %76 : vector<1x32xf32>
    %78 = arith.mulf %77, %62 : vector<1x32xf32>
    %79 = vector.broadcast %78 : vector<1x32xf32> to vector<8x32xf32>
    %80 = arith.mulf %69, %79 : vector<8x32xf32>
    %81 = vector.broadcast %63 : vector<1x32xf32> to vector<8x32xf32>
    %82 = arith.addf %80, %81 : vector<8x32xf32>
    %cst_44 = arith.constant 0.000000e+00 : f32
    %83 = vector.broadcast %cst_44 : f32 to vector<8x32xf32>
    %84 = arith.maximumf %82, %83 : vector<8x32xf32>
    %c0_45 = arith.constant 0 : index
    %c0_46 = arith.constant 0 : index
    %85 = vector.load %arg13[%c0_45, %c0_46] : memref<32x32xf32, #tpu.memory_space<vmem>>, vector<32x32xf32>
    %c0_47 = arith.constant 0 : index
    %c0_48 = arith.constant 0 : index
    %86 = vector.load %arg14[%c0_47, %c0_48] : memref<1x32xf32, #tpu.memory_space<vmem>>, vector<1x32xf32>
    %cst_49 = arith.constant dense<0.000000e+00> : vector<8x32xf32>
    %87 = tpu.matmul %84, %85, %cst_49 {dimension_numbers = #tpu.dot_dimension_numbers<[1], [0], [0], [1], [0, 0, 1, 1], [], []>} : vector<8x32xf32>, vector<32x32xf32>, vector<8x32xf32> -> vector<8x32xf32>
    %88 = vector.broadcast %86 : vector<1x32xf32> to vector<8x32xf32>
    %89 = arith.addf %87, %88 : vector<8x32xf32>
    %c0_50 = arith.constant 0 : index
    %c0_51 = arith.constant 0 : index
    %90 = vector.load %arg15[%c0_50, %c0_51] : memref<1x32xf32, #tpu.memory_space<vmem>>, vector<1x32xf32>
    %c0_52 = arith.constant 0 : index
    %c0_53 = arith.constant 0 : index
    %91 = vector.load %arg16[%c0_52, %c0_53] : memref<1x32xf32, #tpu.memory_space<vmem>>, vector<1x32xf32>
    %cst_54 = arith.constant dense<0.000000e+00> : vector<32xf32>
    %92 = vector.multi_reduction <add>, %89, %cst_54 [0] : vector<8x32xf32> to vector<32xf32>
    %93 = vector.shape_cast %92 : vector<32xf32> to vector<1x32xf32>
    %cst_55 = arith.constant 8.000000e+00 : f32
    %94 = vector.broadcast %cst_55 : f32 to vector<1x32xf32>
    %95 = arith.divf %93, %94 : vector<1x32xf32>
    %96 = vector.broadcast %95 : vector<1x32xf32> to vector<8x32xf32>
    %97 = arith.subf %89, %96 : vector<8x32xf32>
    %98 = arith.mulf %97, %97 : vector<8x32xf32>
    %cst_56 = arith.constant dense<0.000000e+00> : vector<32xf32>
    %99 = vector.multi_reduction <add>, %98, %cst_56 [0] : vector<8x32xf32> to vector<32xf32>
    %100 = vector.shape_cast %99 : vector<32xf32> to vector<1x32xf32>
    %cst_57 = arith.constant 8.000000e+00 : f32
    %101 = vector.broadcast %cst_57 : f32 to vector<1x32xf32>
    %102 = arith.divf %100, %101 : vector<1x32xf32>
    %cst_58 = arith.constant 9.99999974E-6 : f32
    %103 = vector.broadcast %cst_58 : f32 to vector<1x32xf32>
    %104 = arith.addf %102, %103 : vector<1x32xf32>
    %105 = math.rsqrt %104 : vector<1x32xf32>
    %106 = arith.mulf %105, %90 : vector<1x32xf32>
    %107 = vector.broadcast %106 : vector<1x32xf32> to vector<8x32xf32>
    %108 = arith.mulf %97, %107 : vector<8x32xf32>
    %109 = vector.broadcast %91 : vector<1x32xf32> to vector<8x32xf32>
    %110 = arith.addf %108, %109 : vector<8x32xf32>
    %c0_59 = arith.constant 0 : index
    %c0_60 = arith.constant 0 : index
    %111 = vector.load %arg17[%c0_59, %c0_60] : memref<32x32xf32, #tpu.memory_space<vmem>>, vector<32x32xf32>
    %c0_61 = arith.constant 0 : index
    %c0_62 = arith.constant 0 : index
    %112 = vector.load %arg18[%c0_61, %c0_62] : memref<1x32xf32, #tpu.memory_space<vmem>>, vector<1x32xf32>
    %cst_63 = arith.constant dense<0.000000e+00> : vector<8x32xf32>
    %113 = tpu.matmul %110, %111, %cst_63 {dimension_numbers = #tpu.dot_dimension_numbers<[1], [0], [0], [1], [0, 0, 1, 1], [], []>} : vector<8x32xf32>, vector<32x32xf32>, vector<8x32xf32> -> vector<8x32xf32>
    %114 = vector.broadcast %112 : vector<1x32xf32> to vector<8x32xf32>
    %115 = arith.addf %113, %114 : vector<8x32xf32>
    %c0_64 = arith.constant 0 : index
    %c0_65 = arith.constant 0 : index
    %116 = vector.load %arg19[%c0_64, %c0_65] : memref<1x32xf32, #tpu.memory_space<vmem>>, vector<1x32xf32>
    %c0_66 = arith.constant 0 : index
    %c0_67 = arith.constant 0 : index
    %117 = vector.load %arg20[%c0_66, %c0_67] : memref<1x32xf32, #tpu.memory_space<vmem>>, vector<1x32xf32>
    %cst_68 = arith.constant dense<0.000000e+00> : vector<32xf32>
    %118 = vector.multi_reduction <add>, %115, %cst_68 [0] : vector<8x32xf32> to vector<32xf32>
    %119 = vector.shape_cast %118 : vector<32xf32> to vector<1x32xf32>
    %cst_69 = arith.constant 8.000000e+00 : f32
    %120 = vector.broadcast %cst_69 : f32 to vector<1x32xf32>
    %121 = arith.divf %119, %120 : vector<1x32xf32>
    %122 = vector.broadcast %121 : vector<1x32xf32> to vector<8x32xf32>
    %123 = arith.subf %115, %122 : vector<8x32xf32>
    %124 = arith.mulf %123, %123 : vector<8x32xf32>
    %cst_70 = arith.constant dense<0.000000e+00> : vector<32xf32>
    %125 = vector.multi_reduction <add>, %124, %cst_70 [0] : vector<8x32xf32> to vector<32xf32>
    %126 = vector.shape_cast %125 : vector<32xf32> to vector<1x32xf32>
    %cst_71 = arith.constant 8.000000e+00 : f32
    %127 = vector.broadcast %cst_71 : f32 to vector<1x32xf32>
    %128 = arith.divf %126, %127 : vector<1x32xf32>
    %cst_72 = arith.constant 9.99999974E-6 : f32
    %129 = vector.broadcast %cst_72 : f32 to vector<1x32xf32>
    %130 = arith.addf %128, %129 : vector<1x32xf32>
    %131 = math.rsqrt %130 : vector<1x32xf32>
    %132 = arith.mulf %131, %116 : vector<1x32xf32>
    %133 = vector.broadcast %132 : vector<1x32xf32> to vector<8x32xf32>
    %134 = arith.mulf %123, %133 : vector<8x32xf32>
    %135 = vector.broadcast %117 : vector<1x32xf32> to vector<8x32xf32>
    %136 = arith.addf %134, %135 : vector<8x32xf32>
    %c0_73 = arith.constant 0 : index
    %c0_74 = arith.constant 0 : index
    %137 = vector.load %arg21[%c0_73, %c0_74] : memref<32x16xf32, #tpu.memory_space<vmem>>, vector<32x16xf32>
    %c0_75 = arith.constant 0 : index
    %c0_76 = arith.constant 0 : index
    %138 = vector.load %arg22[%c0_75, %c0_76] : memref<1x16xf32, #tpu.memory_space<vmem>>, vector<1x16xf32>
    %cst_77 = arith.constant dense<0.000000e+00> : vector<8x16xf32>
    %139 = tpu.matmul %136, %137, %cst_77 {dimension_numbers = #tpu.dot_dimension_numbers<[1], [0], [0], [1], [0, 0, 1, 1], [], []>} : vector<8x32xf32>, vector<32x16xf32>, vector<8x16xf32> -> vector<8x16xf32>
    %140 = vector.broadcast %138 : vector<1x16xf32> to vector<8x16xf32>
    %141 = arith.addf %139, %140 : vector<8x16xf32>
    %c0_78 = arith.constant 0 : index
    %c0_79 = arith.constant 0 : index
    %142 = vector.load %arg23[%c0_78, %c0_79] : memref<1x16xf32, #tpu.memory_space<vmem>>, vector<1x16xf32>
    %c0_80 = arith.constant 0 : index
    %c0_81 = arith.constant 0 : index
    %143 = vector.load %arg24[%c0_80, %c0_81] : memref<1x16xf32, #tpu.memory_space<vmem>>, vector<1x16xf32>
    %cst_82 = arith.constant dense<0.000000e+00> : vector<16xf32>
    %144 = vector.multi_reduction <add>, %141, %cst_82 [0] : vector<8x16xf32> to vector<16xf32>
    %145 = vector.shape_cast %144 : vector<16xf32> to vector<1x16xf32>
    %cst_83 = arith.constant 8.000000e+00 : f32
    %146 = vector.broadcast %cst_83 : f32 to vector<1x16xf32>
    %147 = arith.divf %145, %146 : vector<1x16xf32>
    %148 = vector.broadcast %147 : vector<1x16xf32> to vector<8x16xf32>
    %149 = arith.subf %141, %148 : vector<8x16xf32>
    %150 = arith.mulf %149, %149 : vector<8x16xf32>
    %cst_84 = arith.constant dense<0.000000e+00> : vector<16xf32>
    %151 = vector.multi_reduction <add>, %150, %cst_84 [0] : vector<8x16xf32> to vector<16xf32>
    %152 = vector.shape_cast %151 : vector<16xf32> to vector<1x16xf32>
    %cst_85 = arith.constant 8.000000e+00 : f32
    %153 = vector.broadcast %cst_85 : f32 to vector<1x16xf32>
    %154 = arith.divf %152, %153 : vector<1x16xf32>
    %cst_86 = arith.constant 9.99999974E-6 : f32
    %155 = vector.broadcast %cst_86 : f32 to vector<1x16xf32>
    %156 = arith.addf %154, %155 : vector<1x16xf32>
    %157 = math.rsqrt %156 : vector<1x16xf32>
    %158 = arith.mulf %157, %142 : vector<1x16xf32>
    %159 = vector.broadcast %158 : vector<1x16xf32> to vector<8x16xf32>
    %160 = arith.mulf %149, %159 : vector<8x16xf32>
    %161 = vector.broadcast %143 : vector<1x16xf32> to vector<8x16xf32>
    %162 = arith.addf %160, %161 : vector<8x16xf32>
    %c0_87 = arith.constant 0 : index
    %c0_88 = arith.constant 0 : index
    %163 = vector.load %arg25[%c0_87, %c0_88] : memref<16x32xf32, #tpu.memory_space<vmem>>, vector<16x32xf32>
    %c0_89 = arith.constant 0 : index
    %c0_90 = arith.constant 0 : index
    %164 = vector.load %arg26[%c0_89, %c0_90] : memref<1x32xf32, #tpu.memory_space<vmem>>, vector<1x32xf32>
    %cst_91 = arith.constant dense<0.000000e+00> : vector<8x32xf32>
    %165 = tpu.matmul %162, %163, %cst_91 {dimension_numbers = #tpu.dot_dimension_numbers<[1], [0], [0], [1], [0, 0, 1, 1], [], []>} : vector<8x16xf32>, vector<16x32xf32>, vector<8x32xf32> -> vector<8x32xf32>
    %166 = vector.broadcast %164 : vector<1x32xf32> to vector<8x32xf32>
    %167 = arith.addf %165, %166 : vector<8x32xf32>
    %c0_92 = arith.constant 0 : index
    %c0_93 = arith.constant 0 : index
    %168 = vector.load %arg27[%c0_92, %c0_93] : memref<1x32xf32, #tpu.memory_space<vmem>>, vector<1x32xf32>
    %c0_94 = arith.constant 0 : index
    %c0_95 = arith.constant 0 : index
    %169 = vector.load %arg28[%c0_94, %c0_95] : memref<1x32xf32, #tpu.memory_space<vmem>>, vector<1x32xf32>
    %cst_96 = arith.constant dense<0.000000e+00> : vector<32xf32>
    %170 = vector.multi_reduction <add>, %167, %cst_96 [0] : vector<8x32xf32> to vector<32xf32>
    %171 = vector.shape_cast %170 : vector<32xf32> to vector<1x32xf32>
    %cst_97 = arith.constant 8.000000e+00 : f32
    %172 = vector.broadcast %cst_97 : f32 to vector<1x32xf32>
    %173 = arith.divf %171, %172 : vector<1x32xf32>
    %174 = vector.broadcast %173 : vector<1x32xf32> to vector<8x32xf32>
    %175 = arith.subf %167, %174 : vector<8x32xf32>
    %176 = arith.mulf %175, %175 : vector<8x32xf32>
    %cst_98 = arith.constant dense<0.000000e+00> : vector<32xf32>
    %177 = vector.multi_reduction <add>, %176, %cst_98 [0] : vector<8x32xf32> to vector<32xf32>
    %178 = vector.shape_cast %177 : vector<32xf32> to vector<1x32xf32>
    %cst_99 = arith.constant 8.000000e+00 : f32
    %179 = vector.broadcast %cst_99 : f32 to vector<1x32xf32>
    %180 = arith.divf %178, %179 : vector<1x32xf32>
    %cst_100 = arith.constant 9.99999974E-6 : f32
    %181 = vector.broadcast %cst_100 : f32 to vector<1x32xf32>
    %182 = arith.addf %180, %181 : vector<1x32xf32>
    %183 = math.rsqrt %182 : vector<1x32xf32>
    %184 = arith.mulf %183, %168 : vector<1x32xf32>
    %185 = vector.broadcast %184 : vector<1x32xf32> to vector<8x32xf32>
    %186 = arith.mulf %175, %185 : vector<8x32xf32>
    %187 = vector.broadcast %169 : vector<1x32xf32> to vector<8x32xf32>
    %188 = arith.addf %186, %187 : vector<8x32xf32>
    %cst_101 = arith.constant 0.000000e+00 : f32
    %189 = vector.broadcast %cst_101 : f32 to vector<8x32xf32>
    %190 = arith.maximumf %188, %189 : vector<8x32xf32>
    %c0_102 = arith.constant 0 : index
    %c0_103 = arith.constant 0 : index
    %191 = vector.load %arg29[%c0_102, %c0_103] : memref<32x64xf32, #tpu.memory_space<vmem>>, vector<32x64xf32>
    %c0_104 = arith.constant 0 : index
    %c0_105 = arith.constant 0 : index
    %192 = vector.load %arg30[%c0_104, %c0_105] : memref<1x64xf32, #tpu.memory_space<vmem>>, vector<1x64xf32>
    %cst_106 = arith.constant dense<0.000000e+00> : vector<8x64xf32>
    %193 = tpu.matmul %190, %191, %cst_106 {dimension_numbers = #tpu.dot_dimension_numbers<[1], [0], [0], [1], [0, 0, 1, 1], [], []>} : vector<8x32xf32>, vector<32x64xf32>, vector<8x64xf32> -> vector<8x64xf32>
    %194 = vector.broadcast %192 : vector<1x64xf32> to vector<8x64xf32>
    %195 = arith.addf %193, %194 : vector<8x64xf32>
    %c0_107 = arith.constant 0 : index
    %c0_108 = arith.constant 0 : index
    %196 = vector.load %arg31[%c0_107, %c0_108] : memref<1x64xf32, #tpu.memory_space<vmem>>, vector<1x64xf32>
    %c0_109 = arith.constant 0 : index
    %c0_110 = arith.constant 0 : index
    %197 = vector.load %arg32[%c0_109, %c0_110] : memref<1x64xf32, #tpu.memory_space<vmem>>, vector<1x64xf32>
    %cst_111 = arith.constant dense<0.000000e+00> : vector<64xf32>
    %198 = vector.multi_reduction <add>, %195, %cst_111 [0] : vector<8x64xf32> to vector<64xf32>
    %199 = vector.shape_cast %198 : vector<64xf32> to vector<1x64xf32>
    %cst_112 = arith.constant 8.000000e+00 : f32
    %200 = vector.broadcast %cst_112 : f32 to vector<1x64xf32>
    %201 = arith.divf %199, %200 : vector<1x64xf32>
    %202 = vector.broadcast %201 : vector<1x64xf32> to vector<8x64xf32>
    %203 = arith.subf %195, %202 : vector<8x64xf32>
    %204 = arith.mulf %203, %203 : vector<8x64xf32>
    %cst_113 = arith.constant dense<0.000000e+00> : vector<64xf32>
    %205 = vector.multi_reduction <add>, %204, %cst_113 [0] : vector<8x64xf32> to vector<64xf32>
    %206 = vector.shape_cast %205 : vector<64xf32> to vector<1x64xf32>
    %cst_114 = arith.constant 8.000000e+00 : f32
    %207 = vector.broadcast %cst_114 : f32 to vector<1x64xf32>
    %208 = arith.divf %206, %207 : vector<1x64xf32>
    %cst_115 = arith.constant 9.99999974E-6 : f32
    %209 = vector.broadcast %cst_115 : f32 to vector<1x64xf32>
    %210 = arith.addf %208, %209 : vector<1x64xf32>
    %211 = math.rsqrt %210 : vector<1x64xf32>
    %212 = arith.mulf %211, %196 : vector<1x64xf32>
    %213 = vector.broadcast %212 : vector<1x64xf32> to vector<8x64xf32>
    %214 = arith.mulf %203, %213 : vector<8x64xf32>
    %215 = vector.broadcast %197 : vector<1x64xf32> to vector<8x64xf32>
    %216 = arith.addf %214, %215 : vector<8x64xf32>
    %cst_116 = arith.constant 0.000000e+00 : f32
    %217 = vector.broadcast %cst_116 : f32 to vector<8x64xf32>
    %218 = arith.maximumf %216, %217 : vector<8x64xf32>
    %c0_117 = arith.constant 0 : index
    %c0_118 = arith.constant 0 : index
    %219 = vector.load %arg33[%c0_117, %c0_118] : memref<64x64xf32, #tpu.memory_space<vmem>>, vector<64x64xf32>
    %c0_119 = arith.constant 0 : index
    %c0_120 = arith.constant 0 : index
    %220 = vector.load %arg34[%c0_119, %c0_120] : memref<1x64xf32, #tpu.memory_space<vmem>>, vector<1x64xf32>
    %cst_121 = arith.constant dense<0.000000e+00> : vector<8x64xf32>
    %221 = tpu.matmul %218, %219, %cst_121 {dimension_numbers = #tpu.dot_dimension_numbers<[1], [0], [0], [1], [0, 0, 1, 1], [], []>} : vector<8x64xf32>, vector<64x64xf32>, vector<8x64xf32> -> vector<8x64xf32>
    %222 = vector.broadcast %220 : vector<1x64xf32> to vector<8x64xf32>
    %223 = arith.addf %221, %222 : vector<8x64xf32>
    %c0_122 = arith.constant 0 : index
    %c0_123 = arith.constant 0 : index
    %224 = vector.load %arg35[%c0_122, %c0_123] : memref<1x64xf32, #tpu.memory_space<vmem>>, vector<1x64xf32>
    %c0_124 = arith.constant 0 : index
    %c0_125 = arith.constant 0 : index
    %225 = vector.load %arg36[%c0_124, %c0_125] : memref<1x64xf32, #tpu.memory_space<vmem>>, vector<1x64xf32>
    %cst_126 = arith.constant dense<0.000000e+00> : vector<64xf32>
    %226 = vector.multi_reduction <add>, %223, %cst_126 [0] : vector<8x64xf32> to vector<64xf32>
    %227 = vector.shape_cast %226 : vector<64xf32> to vector<1x64xf32>
    %cst_127 = arith.constant 8.000000e+00 : f32
    %228 = vector.broadcast %cst_127 : f32 to vector<1x64xf32>
    %229 = arith.divf %227, %228 : vector<1x64xf32>
    %230 = vector.broadcast %229 : vector<1x64xf32> to vector<8x64xf32>
    %231 = arith.subf %223, %230 : vector<8x64xf32>
    %232 = arith.mulf %231, %231 : vector<8x64xf32>
    %cst_128 = arith.constant dense<0.000000e+00> : vector<64xf32>
    %233 = vector.multi_reduction <add>, %232, %cst_128 [0] : vector<8x64xf32> to vector<64xf32>
    %234 = vector.shape_cast %233 : vector<64xf32> to vector<1x64xf32>
    %cst_129 = arith.constant 8.000000e+00 : f32
    %235 = vector.broadcast %cst_129 : f32 to vector<1x64xf32>
    %236 = arith.divf %234, %235 : vector<1x64xf32>
    %cst_130 = arith.constant 9.99999974E-6 : f32
    %237 = vector.broadcast %cst_130 : f32 to vector<1x64xf32>
    %238 = arith.addf %236, %237 : vector<1x64xf32>
    %239 = math.rsqrt %238 : vector<1x64xf32>
    %240 = arith.mulf %239, %224 : vector<1x64xf32>
    %241 = vector.broadcast %240 : vector<1x64xf32> to vector<8x64xf32>
    %242 = arith.mulf %231, %241 : vector<8x64xf32>
    %243 = vector.broadcast %225 : vector<1x64xf32> to vector<8x64xf32>
    %244 = arith.addf %242, %243 : vector<8x64xf32>
    %cst_131 = arith.constant 0.000000e+00 : f32
    %245 = vector.broadcast %cst_131 : f32 to vector<8x64xf32>
    %246 = arith.maximumf %244, %245 : vector<8x64xf32>
    %c0_132 = arith.constant 0 : index
    %c0_133 = arith.constant 0 : index
    %247 = vector.load %arg37[%c0_132, %c0_133] : memref<64x32xf32, #tpu.memory_space<vmem>>, vector<64x32xf32>
    %c0_134 = arith.constant 0 : index
    %c0_135 = arith.constant 0 : index
    %248 = vector.load %arg38[%c0_134, %c0_135] : memref<1x32xf32, #tpu.memory_space<vmem>>, vector<1x32xf32>
    %cst_136 = arith.constant dense<0.000000e+00> : vector<8x32xf32>
    %249 = tpu.matmul %246, %247, %cst_136 {dimension_numbers = #tpu.dot_dimension_numbers<[1], [0], [0], [1], [0, 0, 1, 1], [], []>} : vector<8x64xf32>, vector<64x32xf32>, vector<8x32xf32> -> vector<8x32xf32>
    %250 = vector.broadcast %248 : vector<1x32xf32> to vector<8x32xf32>
    %251 = arith.addf %249, %250 : vector<8x32xf32>
    %cst_137 = arith.constant 0.000000e+00 : f32
    %252 = vector.broadcast %cst_137 : f32 to vector<8x32xf32>
    %253 = arith.maximumf %251, %252 : vector<8x32xf32>
    %cst_138 = arith.constant 0.000000e+00 : f32
    %254 = vector.broadcast %cst_138 : f32 to vector<8x80xf32>
    %255 = tpu.concatenate %253, %162, %254 in 1 : vector<8x32xf32>, vector<8x16xf32>, vector<8x80xf32> -> vector<8x128xf32>
    %c0_139 = arith.constant 0 : index
    %c0_140 = arith.constant 0 : index
    %256 = vector.load %arg39[%c0_139, %c0_140] : memref<8x128xf32, #tpu.memory_space<vmem>>, vector<8x128xf32>
    tpu.vector_store %arg39[%c0_139, %c0_140], %255 {strides = array<i32>} : memref<8x128xf32, #tpu.memory_space<vmem>>, vector<8x128xf32>,
    return
  }
}

</mosaic_0001>

<llo_original>
// kernel: tpu_custom_call.1
$region0: #{tpu_custom_call.1}
  #allocation0 [shape = 'u32[]', space=smem, size = 0x4, offset = 0x4, fixed_abs, tag = 'smem constant byte address 0x4 - core index']
  #allocation1 [shape = 'u32[144,128]{1,0:T(1,128)}', space=vmem, size = 0x12000, scoped, tag = 'internal scratch']
  %s0 = inlined_call_operand.smem [shape: u32[40], index: -1, kind: input, shape index: {}]
  %s1 = sld [smem:[%s0]]
  %s2 = scalar_lea.smem %s0, 1
  %s3 = sld [smem:[%s2]]
  %s4 = scalar_lea.smem %s0, 2
  %s5 = sld [smem:[%s4]]
  %s6 = scalar_lea.smem %s0, 3
  %s7 = sld [smem:[%s6]]
  %s8 = scalar_lea.smem %s0, 4
  %s9 = sld [smem:[%s8]]
  %s10 = scalar_lea.smem %s0, 5
  %s11 = sld [smem:[%s10]]
  %s12 = scalar_lea.smem %s0, 6
  %s13 = sld [smem:[%s12]]
  %s14 = scalar_lea.smem %s0, 7
  %s15 = sld [smem:[%s14]]
  %s16 = scalar_lea.smem %s0, 8
  %s17 = sld [smem:[%s16]]
  %s18 = scalar_lea.smem %s0, 9
  %s19 = sld [smem:[%s18]]
  %s20 = scalar_lea.smem %s0, 10
  %s21 = sld [smem:[%s20]]
  %s22 = scalar_lea.smem %s0, 11
  %s23 = sld [smem:[%s22]]
  %s24 = scalar_lea.smem %s0, 12
  %s25 = sld [smem:[%s24]]
  %s26 = scalar_lea.smem %s0, 13
  %s27 = sld [smem:[%s26]]
  %s28 = scalar_lea.smem %s0, 14
  %s29 = sld [smem:[%s28]]
  %s30 = scalar_lea.smem %s0, 15
  %s31 = sld [smem:[%s30]]
  %s32 = scalar_lea.smem %s0, 16
  %s33 = sld [smem:[%s32]]
  %s34 = scalar_lea.smem %s0, 17
  %s35 = sld [smem:[%s34]]
  %s36 = scalar_lea.smem %s0, 18
  %s37 = sld [smem:[%s36]]
  %s38 = scalar_lea.smem %s0, 19
  %s39 = sld [smem:[%s38]]
  %s40 = scalar_lea.smem %s0, 20
  %s41 = sld [smem:[%s40]]
  %s42 = scalar_lea.smem %s0, 21
  %s43 = sld [smem:[%s42]]
  %s44 = scalar_lea.smem %s0, 22
  %s45 = sld [smem:[%s44]]
  %s46 = scalar_lea.smem %s0, 23
  %s47 = sld [smem:[%s46]]
  %s48 = scalar_lea.smem %s0, 24
  %s49 = sld [smem:[%s48]]
  %s50 = scalar_lea.smem %s0, 25
  %s51 = sld [smem:[%s50]]
  %s52 = scalar_lea.smem %s0, 26
  %s53 = sld [smem:[%s52]]
  %s54 = scalar_lea.smem %s0, 27
  %s55 = sld [smem:[%s54]]
  %s56 = scalar_lea.smem %s0, 28
  %s57 = sld [smem:[%s56]]
  %s58 = scalar_lea.smem %s0, 29
  %s59 = sld [smem:[%s58]]
  %s60 = scalar_lea.smem %s0, 30
  %s61 = sld [smem:[%s60]]
  %s62 = scalar_lea.smem %s0, 31
  %s63 = sld [smem:[%s62]]
  %s64 = scalar_lea.smem %s0, 32
  %s65 = sld [smem:[%s64]]
  %s66 = scalar_lea.smem %s0, 33
  %s67 = sld [smem:[%s66]]
  %s68 = scalar_lea.smem %s0, 34
  %s69 = sld [smem:[%s68]]
  %s70 = scalar_lea.smem %s0, 35
  %s71 = sld [smem:[%s70]]
  %s72 = scalar_lea.smem %s0, 36
  %s73 = sld [smem:[%s72]]
  %s74 = scalar_lea.smem %s0, 37
  %s75 = sld [smem:[%s74]]
  %s76 = scalar_lea.smem %s0, 38
  %s77 = sld [smem:[%s76]]
  %s78 = scalar_lea.smem %s0, 39
  %s79 = sld [smem:[%s78]]
  %s80 = sld [smem:[#allocation0]]
  $region226: #{tpu_custom_call.1} parent=0
    _
  %s82 = ssub.s32 1, %s80
  %s83 = scalar_select 0, %s82, %s80
  $region1: #{tpu_custom_call.1} parent=0
    #allocation2 [shape = 'u8[4096]{0}', space=vmem, size = 0x1000, scoped, tag = 'input window, operand 0, single buffered']
    #allocation3 [shape = 's32[1]{0}', space=sflag, size = 0x4, scoped, tag = 'scoped memory for tpu_custom_call.1']
    #allocation4 [shape = 's32[1]{0}', space=sflag, size = 0x4, scoped, tag = 'scoped memory for tpu_custom_call.1']
    #allocation5 [shape = 'u8[512]{0}', space=vmem, size = 0x400, scoped, tag = 'input window, operand 3, single buffered']
    #allocation6 [shape = 's32[1]{0}', space=sflag, size = 0x4, scoped, tag = 'scoped memory for tpu_custom_call.1']
    #allocation7 [shape = 'u8[512]{0}', space=vmem, size = 0x400, scoped, tag = 'input window, operand 4, single buffered']
    #allocation8 [shape = 'u8[512]{0}', space=vmem, size = 0x400, scoped, tag = 'input window, operand 6, single buffered']
    #allocation9 [shape = 's32[1]{0}', space=sflag, size = 0x4, scoped, tag = 'scoped memory for tpu_custom_call.1']
    #allocation10 [shape = 'u8[512]{0}', space=vmem, size = 0x400, scoped, tag = 'input window, operand 7, single buffered']
    #allocation11 [shape = 'u8[512]{0}', space=vmem, size = 0x400, scoped, tag = 'input window, operand 8, single buffered']
    #allocation12 [shape = 's32[1]{0}', space=sflag, size = 0x4, scoped, tag = 'scoped memory for tpu_custom_call.1']
    #allocation13 [shape = 'u8[512]{0}', space=vmem, size = 0x400, scoped, tag = 'input window, operand 10, single buffered']
    #allocation14 [shape = 'u8[512]{0}', space=vmem, size = 0x400, scoped, tag = 'input window, operand 11, single buffered']
    #allocation15 [shape = 's32[1]{0}', space=sflag, size = 0x4, scoped, tag = 'scoped memory for tpu_custom_call.1']
    #allocation16 [shape = 'u8[512]{0}', space=vmem, size = 0x400, scoped, tag = 'input window, operand 12, single buffered']
    #allocation17 [shape = 'u8[512]{0}', space=vmem, size = 0x400, scoped, tag = 'input window, operand 16, single buffered']
    #allocation18 [shape = 's32[1]{0}', space=sflag, size = 0x4, scoped, tag = 'scoped memory for tpu_custom_call.1']
    #allocation19 [shape = 'u8[512]{0}', space=vmem, size = 0x400, scoped, tag = 'input window, operand 18, single buffered']
    #allocation20 [shape = 'u8[512]{0}', space=vmem, size = 0x400, scoped, tag = 'input window, operand 19, single buffered']
    #allocation21 [shape = 's32[1]{0}', space=sflag, size = 0x4, scoped, tag = 'scoped memory for tpu_custom_call.1']
    #allocation22 [shape = 'u8[512]{0}', space=vmem, size = 0x400, scoped, tag = 'input window, operand 20, single buffered']
    #allocation23 [shape = 'u8[512]{0}', space=vmem, size = 0x400, scoped, tag = 'input window, operand 22, single buffered']
    #allocation24 [shape = 's32[1]{0}', space=sflag, size = 0x4, scoped, tag = 'scoped memory for tpu_custom_call.1']
    #allocation25 [shape = 'u8[8192]{0}', space=vmem, size = 0x2000, scoped, tag = 'input window, operand 25, single buffered']
    #allocation26 [shape = 'u8[4096]{0}', space=vmem, size = 0x1000, scoped, tag = 'output window, operand 0, single buffered']
    %84 = vsyncpa [#allocation3], 0
    %85 = vsyncpa [#allocation6], 0
    %86 = vsyncpa [#allocation9], 0
    %87 = vsyncpa [#allocation12], 0
    %88 = vsyncpa [#allocation15], 0
    %89 = vsyncpa [#allocation18], 0
    %90 = vsyncpa [#allocation21], 0
    %91 = vsyncpa [#allocation24], 0
    %92 = vsyncpa [#allocation4], 0
    // Predicated region
    $region2: #{tpu_custom_call.1} parent=1 // pred_check
      _
    $region3: #{tpu_custom_call.1} parent=1 // pred_check_branch
      %94 = sbr.rel (0) target = $region5
    $region4: #{tpu_custom_call.1} parent=1 // pred_region
      %s96 = ssub.s32 128, 128
      %97 = vsyncadd [#allocation3], %s96
      %s99 = sshll.u32 [#allocation2], 4
      %s100 = int_to_ptr.vmem [resolvable:$true] %s99
      %102 = dma.hbm_to_vmem [thread:$0]  %s1, 128, %s100, [#allocation3]
    $region5: #{tpu_custom_call.1} parent=1 // pred_fallthru
      _
    // Predicated region
    $region6: #{tpu_custom_call.1} parent=1 // pred_check
      _
    $region7: #{tpu_custom_call.1} parent=1 // pred_check_branch
      %104 = sbr.rel (0) target = $region9
    $region8: #{tpu_custom_call.1} parent=1 // pred_region
      _
    $region9: #{tpu_custom_call.1} parent=1 // pred_fallthru
      _
    // Predicated region
    $region10: #{tpu_custom_call.1} parent=1 // pred_check
      _
    $region11: #{tpu_custom_call.1} parent=1 // pred_check_branch
      %106 = sbr.rel (0) target = $region13
    $region12: #{tpu_custom_call.1} parent=1 // pred_region
      _
    $region13: #{tpu_custom_call.1} parent=1 // pred_fallthru
      _
    // Predicated region
    $region14: #{tpu_custom_call.1} parent=1 // pred_check
      _
    $region15: #{tpu_custom_call.1} parent=1 // pred_check_branch
      %108 = sbr.rel (0) target = $region17
    $region16: #{tpu_custom_call.1} parent=1 // pred_region
      %s110 = ssub.s32 16, 16
      %111 = vsyncadd [#allocation6], %s110
      %s113 = sshll.u32 [#allocation5], 4
      %s114 = int_to_ptr.vmem [resolvable:$true] %s113
      %116 = dma.hbm_to_vmem [thread:$0]  %s7, 16, %s114, [#allocation6]
    $region17: #{tpu_custom_call.1} parent=1 // pred_fallthru
      _
    // Predicated region
    $region18: #{tpu_custom_call.1} parent=1 // pred_check
      _
    $region19: #{tpu_custom_call.1} parent=1 // pred_check_branch
      %118 = sbr.rel (0) target = $region21
    $region20: #{tpu_custom_call.1} parent=1 // pred_region
      %s120 = ssub.s32 16, 16
      %121 = vsyncadd [#allocation6], %s120
      %s123 = sshll.u32 [#allocation7], 4
      %s124 = int_to_ptr.vmem [resolvable:$true] %s123
      %126 = dma.hbm_to_vmem [thread:$0]  %s9, 16, %s124, [#allocation6]
    $region21: #{tpu_custom_call.1} parent=1 // pred_fallthru
      _
    // Predicated region
    $region22: #{tpu_custom_call.1} parent=1 // pred_check
      _
    $region23: #{tpu_custom_call.1} parent=1 // pred_check_branch
      %128 = sbr.rel (0) target = $region25
    $region24: #{tpu_custom_call.1} parent=1 // pred_region
      _
    $region25: #{tpu_custom_call.1} parent=1 // pred_fallthru
      _
    // Predicated region
    $region26: #{tpu_custom_call.1} parent=1 // pred_check
      _
    $region27: #{tpu_custom_call.1} parent=1 // pred_check_branch
      %130 = sbr.rel (0) target = $region29
    $region28: #{tpu_custom_call.1} parent=1 // pred_region
      %s132 = ssub.s32 16, 16
      %133 = vsyncadd [#allocation9], %s132
      %s135 = sshll.u32 [#allocation8], 4
      %s136 = int_to_ptr.vmem [resolvable:$true] %s135
      %138 = dma.hbm_to_vmem [thread:$0]  %s13, 16, %s136, [#allocation9]
    $region29: #{tpu_custom_call.1} parent=1 // pred_fallthru
      _
    // Predicated region
    $region30: #{tpu_custom_call.1} parent=1 // pred_check
      _
    $region31: #{tpu_custom_call.1} parent=1 // pred_check_branch
      %140 = sbr.rel (0) target = $region33
    $region32: #{tpu_custom_call.1} parent=1 // pred_region
      %s142 = ssub.s32 16, 16
      %143 = vsyncadd [#allocation9], %s142
      %s145 = sshll.u32 [#allocation10], 4
      %s146 = int_to_ptr.vmem [resolvable:$true] %s145
      %148 = dma.hbm_to_vmem [thread:$0]  %s15, 16, %s146, [#allocation9]
    $region33: #{tpu_custom_call.1} parent=1 // pred_fallthru
      _
    // Predicated region
    $region34: #{tpu_custom_call.1} parent=1 // pred_check
      _
    $region35: #{tpu_custom_call.1} parent=1 // pred_check_branch
      %150 = sbr.rel (0) target = $region37
    $region36: #{tpu_custom_call.1} parent=1 // pred_region
      %s152 = ssub.s32 16, 16
      %153 = vsyncadd [#allocation12], %s152
      %s155 = sshll.u32 [#allocation11], 4
      %s156 = int_to_ptr.vmem [resolvable:$true] %s155
      %158 = dma.hbm_to_vmem [thread:$0]  %s17, 16, %s156, [#allocation12]
    $region37: #{tpu_custom_call.1} parent=1 // pred_fallthru
      _
    // Predicated region
    $region38: #{tpu_custom_call.1} parent=1 // pred_check
      _
    $region39: #{tpu_custom_call.1} parent=1 // pred_check_branch
      %160 = sbr.rel (0) target = $region41
    $region40: #{tpu_custom_call.1} parent=1 // pred_region
      _
    $region41: #{tpu_custom_call.1} parent=1 // pred_fallthru
      _
    // Predicated region
    $region42: #{tpu_custom_call.1} parent=1 // pred_check
      _
    $region43: #{tpu_custom_call.1} parent=1 // pred_check_branch
      %162 = sbr.rel (0) target = $region45
    $region44: #{tpu_custom_call.1} parent=1 // pred_region
      %s164 = ssub.s32 16, 16
      %165 = vsyncadd [#allocation12], %s164
      %s167 = sshll.u32 [#allocation13], 4
      %s168 = int_to_ptr.vmem [resolvable:$true] %s167
      %170 = dma.hbm_to_vmem [thread:$0]  %s21, 16, %s168, [#allocation12]
    $region45: #{tpu_custom_call.1} parent=1 // pred_fallthru
      _
    // Predicated region
    $region46: #{tpu_custom_call.1} parent=1 // pred_check
      _
    $region47: #{tpu_custom_call.1} parent=1 // pred_check_branch
      %172 = sbr.rel (0) target = $region49
    $region48: #{tpu_custom_call.1} parent=1 // pred_region
      %s174 = ssub.s32 16, 16
      %175 = vsyncadd [#allocation15], %s174
      %s177 = sshll.u32 [#allocation14], 4
      %s178 = int_to_ptr.vmem [resolvable:$true] %s177
      %180 = dma.hbm_to_vmem [thread:$0]  %s23, 16, %s178, [#allocation15]
    $region49: #{tpu_custom_call.1} parent=1 // pred_fallthru
      _
    // Predicated region
    $region50: #{tpu_custom_call.1} parent=1 // pred_check
      _
    $region51: #{tpu_custom_call.1} parent=1 // pred_check_branch
      %182 = sbr.rel (0) target = $region53
    $region52: #{tpu_custom_call.1} parent=1 // pred_region
      %s184 = ssub.s32 16, 16
      %185 = vsyncadd [#allocation15], %s184
      %s187 = sshll.u32 [#allocation16], 4
      %s188 = int_to_ptr.vmem [resolvable:$true] %s187
      %190 = dma.hbm_to_vmem [thread:$0]  %s25, 16, %s188, [#allocation15]
    $region53: #{tpu_custom_call.1} parent=1 // pred_fallthru
      _
    // Predicated region
    $region54: #{tpu_custom_call.1} parent=1 // pred_check
      _
    $region55: #{tpu_custom_call.1} parent=1 // pred_check_branch
      %192 = sbr.rel (0) target = $region57
    $region56: #{tpu_custom_call.1} parent=1 // pred_region
      _
    $region57: #{tpu_custom_call.1} parent=1 // pred_fallthru
      _
    // Predicated region
    $region58: #{tpu_custom_call.1} parent=1 // pred_check
      _
    $region59: #{tpu_custom_call.1} parent=1 // pred_check_branch
      %194 = sbr.rel (0) target = $region61
    $region60: #{tpu_custom_call.1} parent=1 // pred_region
      _
    $region61: #{tpu_custom_call.1} parent=1 // pred_fallthru
      _
    // Predicated region
    $region62: #{tpu_custom_call.1} parent=1 // pred_check
      _
    $region63: #{tpu_custom_call.1} parent=1 // pred_check_branch
      %196 = sbr.rel (0) target = $region65
    $region64: #{tpu_custom_call.1} parent=1 // pred_region
      _
    $region65: #{tpu_custom_call.1} parent=1 // pred_fallthru
      _
    // Predicated region
    $region66: #{tpu_custom_call.1} parent=1 // pred_check
      _
    $region67: #{tpu_custom_call.1} parent=1 // pred_check_branch
      %198 = sbr.rel (0) target = $region69
    $region68: #{tpu_custom_call.1} parent=1 // pred_region
      %s200 = ssub.s32 16, 16
      %201 = vsyncadd [#allocation18], %s200
      %s203 = sshll.u32 [#allocation17], 4
      %s204 = int_to_ptr.vmem [resolvable:$true] %s203
      %206 = dma.hbm_to_vmem [thread:$0]  %s33, 16, %s204, [#allocation18]
    $region69: #{tpu_custom_call.1} parent=1 // pred_fallthru
      _
    // Predicated region
    $region70: #{tpu_custom_call.1} parent=1 // pred_check
      _
    $region71: #{tpu_custom_call.1} parent=1 // pred_check_branch
      %208 = sbr.rel (0) target = $region73
    $region72: #{tpu_custom_call.1} parent=1 // pred_region
      _
    $region73: #{tpu_custom_call.1} parent=1 // pred_fallthru
      _
    // Predicated region
    $region74: #{tpu_custom_call.1} parent=1 // pred_check
      _
    $region75: #{tpu_custom_call.1} parent=1 // pred_check_branch
      %210 = sbr.rel (0) target = $region77
    $region76: #{tpu_custom_call.1} parent=1 // pred_region
      %s212 = ssub.s32 16, 16
      %213 = vsyncadd [#allocation18], %s212
      %s215 = sshll.u32 [#allocation19], 4
      %s216 = int_to_ptr.vmem [resolvable:$true] %s215
      %218 = dma.hbm_to_vmem [thread:$0]  %s37, 16, %s216, [#allocation18]
    $region77: #{tpu_custom_call.1} parent=1 // pred_fallthru
      _
    // Predicated region
    $region78: #{tpu_custom_call.1} parent=1 // pred_check
      _
    $region79: #{tpu_custom_call.1} parent=1 // pred_check_branch
      %220 = sbr.rel (0) target = $region81
    $region80: #{tpu_custom_call.1} parent=1 // pred_region
      %s222 = ssub.s32 16, 16
      %223 = vsyncadd [#allocation21], %s222
      %s225 = sshll.u32 [#allocation20], 4
      %s226 = int_to_ptr.vmem [resolvable:$true] %s225
      %228 = dma.hbm_to_vmem [thread:$0]  %s39, 16, %s226, [#allocation21]
    $region81: #{tpu_custom_call.1} parent=1 // pred_fallthru
      _
    // Predicated region
    $region82: #{tpu_custom_call.1} parent=1 // pred_check
      _
    $region83: #{tpu_custom_call.1} parent=1 // pred_check_branch
      %230 = sbr.rel (0) target = $region85
    $region84: #{tpu_custom_call.1} parent=1 // pred_region
      %s232 = ssub.s32 16, 16
      %233 = vsyncadd [#allocation21], %s232
      %s235 = sshll.u32 [#allocation22], 4
      %s236 = int_to_ptr.vmem [resolvable:$true] %s235
      %238 = dma.hbm_to_vmem [thread:$0]  %s41, 16, %s236, [#allocation21]
    $region85: #{tpu_custom_call.1} parent=1 // pred_fallthru
      _
    // Predicated region
    $region86: #{tpu_custom_call.1} parent=1 // pred_check
      _
    $region87: #{tpu_custom_call.1} parent=1 // pred_check_branch
      %240 = sbr.rel (0) target = $region89
    $region88: #{tpu_custom_call.1} parent=1 // pred_region
      _
    $region89: #{tpu_custom_call.1} parent=1 // pred_fallthru
      _
    // Predicated region
    $region90: #{tpu_custom_call.1} parent=1 // pred_check
      _
    $region91: #{tpu_custom_call.1} parent=1 // pred_check_branch
      %242 = sbr.rel (0) target = $region93
    $region92: #{tpu_custom_call.1} parent=1 // pred_region
      %s244 = ssub.s32 16, 16
      %245 = vsyncadd [#allocation24], %s244
      %s247 = sshll.u32 [#allocation23], 4
      %s248 = int_to_ptr.vmem [resolvable:$true] %s247
      %250 = dma.hbm_to_vmem [thread:$0]  %s45, 16, %s248, [#allocation24]
    $region93: #{tpu_custom_call.1} parent=1 // pred_fallthru
      _
    // Predicated region
    $region94: #{tpu_custom_call.1} parent=1 // pred_check
      _
    $region95: #{tpu_custom_call.1} parent=1 // pred_check_branch
      %252 = sbr.rel (0) target = $region97
    $region96: #{tpu_custom_call.1} parent=1 // pred_region
      _
    $region97: #{tpu_custom_call.1} parent=1 // pred_fallthru
      _
    // Predicated region
    $region98: #{tpu_custom_call.1} parent=1 // pred_check
      _
    $region99: #{tpu_custom_call.1} parent=1 // pred_check_branch
      %254 = sbr.rel (0) target = $region101
    $region100: #{tpu_custom_call.1} parent=1 // pred_region
      _
    $region101: #{tpu_custom_call.1} parent=1 // pred_fallthru
      _
    // Predicated region
    $region102: #{tpu_custom_call.1} parent=1 // pred_check
      _
    $region103: #{tpu_custom_call.1} parent=1 // pred_check_branch
      %256 = sbr.rel (0) target = $region105
    $region104: #{tpu_custom_call.1} parent=1 // pred_region
      %s258 = ssub.s32 256, 256
      %259 = vsyncadd [#allocation24], %s258
      %s260 = sshll.u32 [#allocation25], 4
      %s261 = int_to_ptr.vmem [resolvable:$true] %s260
      %266 = dma.hbm_to_vmem [thread:$0]  %s51, 256, %s261, [#allocation24], 128, 128, 8
    $region105: #{tpu_custom_call.1} parent=1 // pred_fallthru
      _
    // Predicated region
    $region106: #{tpu_custom_call.1} parent=1 // pred_check
      _
    $region107: #{tpu_custom_call.1} parent=1 // pred_check_branch
      %268 = sbr.rel (0) target = $region109
    $region108: #{tpu_custom_call.1} parent=1 // pred_region
      _
    $region109: #{tpu_custom_call.1} parent=1 // pred_fallthru
      _
    // Predicated region
    $region110: #{tpu_custom_call.1} parent=1 // pred_check
      _
    $region111: #{tpu_custom_call.1} parent=1 // pred_check_branch
      %270 = sbr.rel (0) target = $region113
    $region112: #{tpu_custom_call.1} parent=1 // pred_region
      _
    $region113: #{tpu_custom_call.1} parent=1 // pred_fallthru
      _
    // Predicated region
    $region114: #{tpu_custom_call.1} parent=1 // pred_check
      _
    $region115: #{tpu_custom_call.1} parent=1 // pred_check_branch
      %272 = sbr.rel (0) target = $region117
    $region116: #{tpu_custom_call.1} parent=1 // pred_region
      _
    $region117: #{tpu_custom_call.1} parent=1 // pred_fallthru
      _
    // Predicated region
    $region118: #{tpu_custom_call.1} parent=1 // pred_check
      _
    $region119: #{tpu_custom_call.1} parent=1 // pred_check_branch
      %274 = sbr.rel (0) target = $region121
    $region120: #{tpu_custom_call.1} parent=1 // pred_region
      _
    $region121: #{tpu_custom_call.1} parent=1 // pred_fallthru
      _
    // Predicated region
    $region122: #{tpu_custom_call.1} parent=1 // pred_check
      _
    $region123: #{tpu_custom_call.1} parent=1 // pred_check_branch
      %276 = sbr.rel (0) target = $region125
    $region124: #{tpu_custom_call.1} parent=1 // pred_region
      _
    $region125: #{tpu_custom_call.1} parent=1 // pred_fallthru
      _
    // Predicated region
    $region126: #{tpu_custom_call.1} parent=1 // pred_check
      _
    $region127: #{tpu_custom_call.1} parent=1 // pred_check_branch
      %278 = sbr.rel (0) target = $region129
    $region128: #{tpu_custom_call.1} parent=1 // pred_region
      _
    $region129: #{tpu_custom_call.1} parent=1 // pred_fallthru
      _
    // Predicated region
    $region130: #{tpu_custom_call.1} parent=1 // pred_check
      _
    $region131: #{tpu_custom_call.1} parent=1 // pred_check_branch
      %280 = sbr.rel (0) target = $region133
    $region132: #{tpu_custom_call.1} parent=1 // pred_region
      _
    $region133: #{tpu_custom_call.1} parent=1 // pred_fallthru
      _
    // Predicated region
    $region134: #{tpu_custom_call.1} parent=1 // pred_check
      _
    $region135: #{tpu_custom_call.1} parent=1 // pred_check_branch
      %282 = sbr.rel (0) target = $region137
    $region136: #{tpu_custom_call.1} parent=1 // pred_region
      _
    $region137: #{tpu_custom_call.1} parent=1 // pred_fallthru
      _
    // Predicated region
    $region138: #{tpu_custom_call.1} parent=1 // pred_check
      _
    $region139: #{tpu_custom_call.1} parent=1 // pred_check_branch
      %284 = sbr.rel (0) target = $region141
    $region140: #{tpu_custom_call.1} parent=1 // pred_region
      _
    $region141: #{tpu_custom_call.1} parent=1 // pred_fallthru
      _
    // Predicated region
    $region142: #{tpu_custom_call.1} parent=1 // pred_check
      _
    $region143: #{tpu_custom_call.1} parent=1 // pred_check_branch
      %286 = sbr.rel (0) target = $region145
    $region144: #{tpu_custom_call.1} parent=1 // pred_region
      _
    $region145: #{tpu_custom_call.1} parent=1 // pred_fallthru
      _
    // Predicated region
    $region146: #{tpu_custom_call.1} parent=1 // pred_check
      _
    $region147: #{tpu_custom_call.1} parent=1 // pred_check_branch
      %288 = sbr.rel (0) target = $region149
    $region148: #{tpu_custom_call.1} parent=1 // pred_region
      _
    $region149: #{tpu_custom_call.1} parent=1 // pred_fallthru
      _
    // Predicated region
    $region150: #{tpu_custom_call.1} parent=1 // pred_check
      _
    $region151: #{tpu_custom_call.1} parent=1 // pred_check_branch
      %290 = sbr.rel (0) target = $region153
    $region152: #{tpu_custom_call.1} parent=1 // pred_region
      _
    $region153: #{tpu_custom_call.1} parent=1 // pred_fallthru
      _
    // Predicated region
    $region154: #{tpu_custom_call.1} parent=1 // pred_check
      _
    $region155: #{tpu_custom_call.1} parent=1 // pred_check_branch
      %292 = sbr.rel (0) target = $region157
    $region156: #{tpu_custom_call.1} parent=1 // pred_region
      _
    $region157: #{tpu_custom_call.1} parent=1 // pred_fallthru
      _
    // Predicated region
    $region158: #{tpu_custom_call.1} parent=1 // pred_check
      _
    $region159: #{tpu_custom_call.1} parent=1 // pred_check_branch
      %294 = sbr.rel (0) target = $region161
    $region160: #{tpu_custom_call.1} parent=1 // pred_region
      %295 = dma.done [#allocation3], 128
    $region161: #{tpu_custom_call.1} parent=1 // pred_fallthru
      _
    // Predicated region
    $region162: #{tpu_custom_call.1} parent=1 // pred_check
      _
    $region163: #{tpu_custom_call.1} parent=1 // pred_check_branch
      %297 = sbr.rel (0) target = $region165
    $region164: #{tpu_custom_call.1} parent=1 // pred_region
      %298 = dma.done [#allocation6], 16
    $region165: #{tpu_custom_call.1} parent=1 // pred_fallthru
      _
    // Predicated region
    $region166: #{tpu_custom_call.1} parent=1 // pred_check
      _
    $region167: #{tpu_custom_call.1} parent=1 // pred_check_branch
      %300 = sbr.rel (0) target = $region169
    $region168: #{tpu_custom_call.1} parent=1 // pred_region
      %301 = dma.done [#allocation6], 16
    $region169: #{tpu_custom_call.1} parent=1 // pred_fallthru
      _
    // Predicated region
    $region170: #{tpu_custom_call.1} parent=1 // pred_check
      _
    $region171: #{tpu_custom_call.1} parent=1 // pred_check_branch
      %303 = sbr.rel (0) target = $region173
    $region172: #{tpu_custom_call.1} parent=1 // pred_region
      %304 = dma.done [#allocation9], 16
    $region173: #{tpu_custom_call.1} parent=1 // pred_fallthru
      _
    // Predicated region
    $region174: #{tpu_custom_call.1} parent=1 // pred_check
      _
    $region175: #{tpu_custom_call.1} parent=1 // pred_check_branch
      %306 = sbr.rel (0) target = $region177
    $region176: #{tpu_custom_call.1} parent=1 // pred_region
      %307 = dma.done [#allocation9], 16
    $region177: #{tpu_custom_call.1} parent=1 // pred_fallthru
      _
    // Predicated region
    $region178: #{tpu_custom_call.1} parent=1 // pred_check
      _
    $region179: #{tpu_custom_call.1} parent=1 // pred_check_branch
      %309 = sbr.rel (0) target = $region181
    $region180: #{tpu_custom_call.1} parent=1 // pred_region
      %310 = dma.done [#allocation12], 16
    $region181: #{tpu_custom_call.1} parent=1 // pred_fallthru
      _
    // Predicated region
    $region182: #{tpu_custom_call.1} parent=1 // pred_check
      _
    $region183: #{tpu_custom_call.1} parent=1 // pred_check_branch
      %312 = sbr.rel (0) target = $region185
    $region184: #{tpu_custom_call.1} parent=1 // pred_region
      %313 = dma.done [#allocation12], 16
    $region185: #{tpu_custom_call.1} parent=1 // pred_fallthru
      _
    // Predicated region
    $region186: #{tpu_custom_call.1} parent=1 // pred_check
      _
    $region187: #{tpu_custom_call.1} parent=1 // pred_check_branch
      %315 = sbr.rel (0) target = $region189
    $region188: #{tpu_custom_call.1} parent=1 // pred_region
      %316 = dma.done [#allocation15], 16
    $region189: #{tpu_custom_call.1} parent=1 // pred_fallthru
      _
    // Predicated region
    $region190: #{tpu_custom_call.1} parent=1 // pred_check
      _
    $region191: #{tpu_custom_call.1} parent=1 // pred_check_branch
      %318 = sbr.rel (0) target = $region193
    $region192: #{tpu_custom_call.1} parent=1 // pred_region
      %319 = dma.done [#allocation15], 16
    $region193: #{tpu_custom_call.1} parent=1 // pred_fallthru
      _
    // Predicated region
    $region194: #{tpu_custom_call.1} parent=1 // pred_check
      _
    $region195: #{tpu_custom_call.1} parent=1 // pred_check_branch
      %321 = sbr.rel (0) target = $region197
    $region196: #{tpu_custom_call.1} parent=1 // pred_region
      %322 = dma.done [#allocation18], 16
    $region197: #{tpu_custom_call.1} parent=1 // pred_fallthru
      _
    // Predicated region
    $region198: #{tpu_custom_call.1} parent=1 // pred_check
      _
    $region199: #{tpu_custom_call.1} parent=1 // pred_check_branch
      %324 = sbr.rel (0) target = $region201
    $region200: #{tpu_custom_call.1} parent=1 // pred_region
      %325 = dma.done [#allocation18], 16
    $region201: #{tpu_custom_call.1} parent=1 // pred_fallthru
      _
    // Predicated region
    $region202: #{tpu_custom_call.1} parent=1 // pred_check
      _
    $region203: #{tpu_custom_call.1} parent=1 // pred_check_branch
      %327 = sbr.rel (0) target = $region205
    $region204: #{tpu_custom_call.1} parent=1 // pred_region
      %328 = dma.done [#allocation21], 16
    $region205: #{tpu_custom_call.1} parent=1 // pred_fallthru
      _
    // Predicated region
    $region206: #{tpu_custom_call.1} parent=1 // pred_check
      _
    $region207: #{tpu_custom_call.1} parent=1 // pred_check_branch
      %330 = sbr.rel (0) target = $region209
    $region208: #{tpu_custom_call.1} parent=1 // pred_region
      %331 = dma.done [#allocation21], 16
    $region209: #{tpu_custom_call.1} parent=1 // pred_fallthru
      _
    // Predicated region
    $region210: #{tpu_custom_call.1} parent=1 // pred_check
      _
    $region211: #{tpu_custom_call.1} parent=1 // pred_check_branch
      %333 = sbr.rel (0) target = $region213
    $region212: #{tpu_custom_call.1} parent=1 // pred_region
      %334 = dma.done [#allocation24], 16
    $region213: #{tpu_custom_call.1} parent=1 // pred_fallthru
      _
    // Predicated region
    $region214: #{tpu_custom_call.1} parent=1 // pred_check
      _
    $region215: #{tpu_custom_call.1} parent=1 // pred_check_branch
      %336 = sbr.rel (0) target = $region217
    $region216: #{tpu_custom_call.1} parent=1 // pred_region
      %337 = dma.done [#allocation24], 256
    $region217: #{tpu_custom_call.1} parent=1 // pred_fallthru
      _
    %v338 = vld [vmem:[#allocation2] sm:$0xff]
    %v339 = vld [vmem:[%s3] sm:$0xff]
    %v340 = vld [vmem:[%s3 + $0x8] sm:$0xff]
    %v341 = vld [vmem:[%s3 + $0x10] sm:$0xff]
    %v342 = vld [vmem:[%s3 + $0x18] sm:$0xff]
    %v343 = vld [vmem:[%s5] sm:$0x1]
    %v345 = vlaneseq
    %v346 = vshrl.u32 %v345, 7
    %v347 = vsub.s32 0, %v346
    %v348 = vrot.slane %v343, %v347
    %vm350 = vcmask 261120
    %v352 = vsel %vm350, %v338, 0
    %354 = vmatprep.subr.mxu0 0.0
    %355 = vmatpush1.msra.mxu0 %v339
    %356 = vmatprep.subr.mxu0 0.0
    %357 = vmatpush1.msra.mxu0 %v340
    %358 = vmatprep.subr.mxu0 0.0
    %359 = vmatpush1.msra.mxu0 %v341
    %360 = vmatprep.subr.mxu0 0.0
    %361 = vmatpush1.msra.mxu0 %v342
    %362 = vmatprep.subr.mxu0 0.0
    %363 = vmatpush1.msra.mxu0 0.0
    %364 = vmatprep.subr.mxu0 0.0
    %365 = vmatpush1.msra.mxu0 0.0
    %366 = vmatprep.subr.mxu0 0.0
    %367 = vmatpush1.msra.mxu0 0.0
    %368 = vmatprep.subr.mxu0 0.0
    %369 = vmatpush1.msra.mxu0 0.0
    %370 = vmatprep.subr.mxu0 0.0
    %371 = vmatpush1.msra.mxu0 0.0
    %372 = vmatprep.subr.mxu0 0.0
    %373 = vmatpush1.msra.mxu0 0.0
    %374 = vmatprep.subr.mxu0 0.0
    %375 = vmatpush1.msra.mxu0 0.0
    %376 = vmatprep.subr.mxu0 0.0
    %377 = vmatpush1.msra.mxu0 0.0
    %378 = vmatprep.subr.mxu0 0.0
    %379 = vmatpush1.msra.mxu0 0.0
    %380 = vmatprep.subr.mxu0 0.0
    %381 = vmatpush1.msra.mxu0 0.0
    %382 = vmatprep.subr.mxu0 0.0
    %383 = vmatpush1.msra.mxu0 0.0
    %384 = vmatprep.subr.mxu0 0.0
    %385 = vmatpush1.msra.mxu0 0.0
    %386 = vmatprep.subr.mxu0 0.0
    %387 = vmatpush1.msra.mxu0 0.0
    %388 = vmatprep.subr.mxu0 0.0
    %389 = vmatpush1.msra.mxu0 0.0
    %390 = vmatprep.subr.mxu0 0.0
    %391 = vmatpush1.msra.mxu0 0.0
    %392 = vmatprep.subr.mxu0 0.0
    %393 = vmatpush1.msra.mxu0 0.0
    %394 = vmatprep.subr.mxu0 0.0
    %395 = vmatpush1.msra.mxu0 0.0
    %396 = vmatprep.subr.mxu0 0.0
    %397 = vmatpush1.msra.mxu0 0.0
    %398 = vmatprep.subr.mxu0 0.0
    %399 = vmatpush1.msra.mxu0 0.0
    %400 = vmatprep.subr.mxu0 0.0
    %401 = vmatpush1.msra.mxu0 0.0
    %402 = vmatprep.subr.mxu0 0.0
    %403 = vmatpush1.msra.mxu0 0.0
    %404 = vmatprep.subr.mxu0 0.0
    %405 = vmatpush1.msra.mxu0 0.0
    %406 = vmatprep.subr.mxu0 0.0
    %407 = vmatpush1.msra.mxu0 0.0
    %408 = vmatprep.subr.mxu0 0.0
    %409 = vmatpush1.msra.mxu0 0.0
    %410 = vmatprep.subr.mxu0 0.0
    %411 = vmatpush1.msra.mxu0 0.0
    %412 = vmatprep.subr.mxu0 0.0
    %413 = vmatpush1.msra.mxu0 0.0
    %414 = vmatprep.subr.mxu0 0.0
    %415 = vmatpush1.msra.mxu0 0.0
    %416 = vmatprep.subr.mxu0 0.0
    %417 = vmatpush1.msra.mxu0 0.0
    %418 = vmatprep.mubr.f32.mxu0 0.0
    %419 = vmatmul.mubr.f32.gmra.mrb[0].mxu0 %v352
    %v420 = vpop.f32.mrb[0].mxu0
    %v421 = vadd.f32 %v348, %v420
    %v422 = vpop.f32.mrb[0].mxu0
    %423 = vdwg.mxu0
    %v424 = vld [vmem:[#allocation5] sm:$0x1]
    %v425 = vld [vmem:[#allocation7] sm:$0x1]
    %vm426 = vcmask 523264
    %v427 = vsel %vm426, %v421, 0.0
    %v428 = vrot.slane %v427, 4
    %v429 = vadd.f32 %v427, %v428
    %v430 = vrot.slane %v429, 2
    %v431 = vadd.f32 %v429, %v430
    %v432 = vrot.slane %v431, 1
    %v433 = vadd.f32 %v431, %v432
    %v434 = vrcp.pop 8.0
    %v435 = vmul.f32 %v433, %v434
    %v436 = vsub.f32 %v421, %v435
    %v437 = vmul.f32 %v436, %v436
    %v438 = vsel %vm426, %v437, 0.0
    %v439 = vrot.slane %v438, 4
    %v440 = vadd.f32 %v438, %v439
    %v441 = vrot.slane %v440, 2
    %v442 = vadd.f32 %v440, %v441
    %v443 = vrot.slane %v442, 1
    %v444 = vadd.f32 %v442, %v443
    %v445 = vmul.f32 %v444, %v434
    %v446 = vadd.f32 %v445, 1e-05
    %v447 = vrsqrt.pop %v446
    %v448 = vmul.f32 %v447, %v424
    %v449 = vlaneseq
    %v450 = vshrl.u32 %v449, 7
    %v451 = vsub.s32 0, %v450
    %v452 = vrot.slane %v448, %v451
    %v453 = vmul.f32 %v436, %v452
    %v455 = vlaneseq
    %v456 = vshrl.u32 %v455, 7
    %v457 = vsub.s32 0, %v456
    %v458 = vrot.slane %v425, %v457
    %v460 = vadd.f32 %v453, %v458
    %v461 = vmax.f32 %v460, 0.0
    %v462 = vld [vmem:[%s11] sm:$0xff]
    %v463 = vld [vmem:[%s11 + $0x8] sm:$0xff]
    %v464 = vld [vmem:[%s11 + $0x10] sm:$0xff]
    %v465 = vld [vmem:[%s11 + $0x18] sm:$0xff]
    %v466 = vld [vmem:[%s11 + $0x20] sm:$0xff]
    %v467 = vld [vmem:[%s11 + $0x28] sm:$0xff]
    %v468 = vld [vmem:[%s11 + $0x30] sm:$0xff]
    %v469 = vld [vmem:[%s11 + $0x38] sm:$0xff]
    %v470 = vld [vmem:[#allocation8] sm:$0x1]
    %v472 = vlaneseq
    %v473 = vshrl.u32 %v472, 7
    %v474 = vsub.s32 0, %v473
    %v475 = vrot.slane %v470, %v474
    %v478 = vsel %vm426, %v461, 0
    %480 = vmatprep.subr.mxu0 0.0
    %481 = vmatpush1.msra.mxu0 %v462
    %482 = vmatprep.subr.mxu0 0.0
    %483 = vmatpush1.msra.mxu0 %v463
    %484 = vmatprep.subr.mxu0 0.0
    %485 = vmatpush1.msra.mxu0 %v464
    %486 = vmatprep.subr.mxu0 0.0
    %487 = vmatpush1.msra.mxu0 %v465
    %488 = vmatprep.subr.mxu0 0.0
    %489 = vmatpush1.msra.mxu0 %v466
    %490 = vmatprep.subr.mxu0 0.0
    %491 = vmatpush1.msra.mxu0 %v467
    %492 = vmatprep.subr.mxu0 0.0
    %493 = vmatpush1.msra.mxu0 %v468
    %494 = vmatprep.subr.mxu0 0.0
    %495 = vmatpush1.msra.mxu0 %v469
    %496 = vmatprep.subr.mxu0 0.0
    %497 = vmatpush1.msra.mxu0 0.0
    %498 = vmatprep.subr.mxu0 0.0
    %499 = vmatpush1.msra.mxu0 0.0
    %500 = vmatprep.subr.mxu0 0.0
    %501 = vmatpush1.msra.mxu0 0.0
    %502 = vmatprep.subr.mxu0 0.0
    %503 = vmatpush1.msra.mxu0 0.0
    %504 = vmatprep.subr.mxu0 0.0
    %505 = vmatpush1.msra.mxu0 0.0
    %506 = vmatprep.subr.mxu0 0.0
    %507 = vmatpush1.msra.mxu0 0.0
    %508 = vmatprep.subr.mxu0 0.0
    %509 = vmatpush1.msra.mxu0 0.0
    %510 = vmatprep.subr.mxu0 0.0
    %511 = vmatpush1.msra.mxu0 0.0
    %512 = vmatprep.subr.mxu0 0.0
    %513 = vmatpush1.msra.mxu0 0.0
    %514 = vmatprep.subr.mxu0 0.0
    %515 = vmatpush1.msra.mxu0 0.0
    %516 = vmatprep.subr.mxu0 0.0
    %517 = vmatpush1.msra.mxu0 0.0
    %518 = vmatprep.subr.mxu0 0.0
    %519 = vmatpush1.msra.mxu0 0.0
    %520 = vmatprep.subr.mxu0 0.0
    %521 = vmatpush1.msra.mxu0 0.0
    %522 = vmatprep.subr.mxu0 0.0
    %523 = vmatpush1.msra.mxu0 0.0
    %524 = vmatprep.subr.mxu0 0.0
    %525 = vmatpush1.msra.mxu0 0.0
    %526 = vmatprep.subr.mxu0 0.0
    %527 = vmatpush1.msra.mxu0 0.0
    %528 = vmatprep.subr.mxu0 0.0
    %529 = vmatpush1.msra.mxu0 0.0
    %530 = vmatprep.subr.mxu0 0.0
    %531 = vmatpush1.msra.mxu0 0.0
    %532 = vmatprep.subr.mxu0 0.0
    %533 = vmatpush1.msra.mxu0 0.0
    %534 = vmatprep.subr.mxu0 0.0
    %535 = vmatpush1.msra.mxu0 0.0
    %536 = vmatprep.subr.mxu0 0.0
    %537 = vmatpush1.msra.mxu0 0.0
    %538 = vmatprep.subr.mxu0 0.0
    %539 = vmatpush1.msra.mxu0 0.0
    %540 = vmatprep.subr.mxu0 0.0
    %541 = vmatpush1.msra.mxu0 0.0
    %542 = vmatprep.subr.mxu0 0.0
    %543 = vmatpush1.msra.mxu0 0.0
    %544 = vmatprep.mubr.f32.mxu0 0.0
    %545 = vmatmul.mubr.f32.gmra.mrb[0].mxu0 %v478
    %v546 = vpop.f32.mrb[0].mxu0
    %v547 = vadd.f32 %v475, %v546
    %v548 = vpop.f32.mrb[0].mxu0
    %549 = vdwg.mxu0
    %v550 = vld [vmem:[#allocation10] sm:$0x1]
    %v551 = vld [vmem:[#allocation11] sm:$0x1]
    %v552 = vsel %vm426, %v547, 0.0
    %v553 = vrot.slane %v552, 4
    %v554 = vadd.f32 %v552, %v553
    %v555 = vrot.slane %v554, 2
    %v556 = vadd.f32 %v554, %v555
    %v557 = vrot.slane %v556, 1
    %v558 = vadd.f32 %v556, %v557
    %v559 = vmul.f32 %v558, %v434
    %v560 = vsub.f32 %v547, %v559
    %v561 = vmul.f32 %v560, %v560
    %v562 = vsel %vm426, %v561, 0.0
    %v563 = vrot.slane %v562, 4
    %v564 = vadd.f32 %v562, %v563
    %v565 = vrot.slane %v564, 2
    %v566 = vadd.f32 %v564, %v565
    %v567 = vrot.slane %v566, 1
    %v568 = vadd.f32 %v566, %v567
    %v569 = vmul.f32 %v568, %v434
    %v570 = vadd.f32 %v569, 1e-05
    %v571 = vrsqrt.pop %v570
    %v572 = vmul.f32 %v571, %v550
    %v573 = vlaneseq
    %v574 = vshrl.u32 %v573, 7
    %v575 = vsub.s32 0, %v574
    %v576 = vrot.slane %v572, %v575
    %v577 = vmul.f32 %v560, %v576
    %v579 = vlaneseq
    %v580 = vshrl.u32 %v579, 7
    %v581 = vsub.s32 0, %v580
    %v582 = vrot.slane %v551, %v581
    %v584 = vadd.f32 %v577, %v582
    %v585 = vmax.f32 %v584, 0.0
    %v586 = vld [vmem:[%s19] sm:$0xff]
    %v587 = vld [vmem:[%s19 + $0x8] sm:$0xff]
    %v588 = vld [vmem:[%s19 + $0x10] sm:$0xff]
    %v589 = vld [vmem:[%s19 + $0x18] sm:$0xff]
    %v590 = vld [vmem:[%s19 + $0x20] sm:$0xff]
    %v591 = vld [vmem:[%s19 + $0x28] sm:$0xff]
    %v592 = vld [vmem:[%s19 + $0x30] sm:$0xff]
    %v593 = vld [vmem:[%s19 + $0x38] sm:$0xff]
    %v594 = vld [vmem:[#allocation13] sm:$0x1]
    %v596 = vlaneseq
    %v597 = vshrl.u32 %v596, 7
    %v598 = vsub.s32 0, %v597
    %v599 = vrot.slane %v594, %v598
    %v602 = vsel %vm426, %v585, 0
    %604 = vmatprep.subr.mxu0 0.0
    %605 = vmatpush1.msra.mxu0 %v586
    %606 = vmatprep.subr.mxu0 0.0
    %607 = vmatpush1.msra.mxu0 %v587
    %608 = vmatprep.subr.mxu0 0.0
    %609 = vmatpush1.msra.mxu0 %v588
    %610 = vmatprep.subr.mxu0 0.0
    %611 = vmatpush1.msra.mxu0 %v589
    %612 = vmatprep.subr.mxu0 0.0
    %613 = vmatpush1.msra.mxu0 %v590
    %614 = vmatprep.subr.mxu0 0.0
    %615 = vmatpush1.msra.mxu0 %v591
    %616 = vmatprep.subr.mxu0 0.0
    %617 = vmatpush1.msra.mxu0 %v592
    %618 = vmatprep.subr.mxu0 0.0
    %619 = vmatpush1.msra.mxu0 %v593
    %620 = vmatprep.subr.mxu0 0.0
    %621 = vmatpush1.msra.mxu0 0.0
    %622 = vmatprep.subr.mxu0 0.0
    %623 = vmatpush1.msra.mxu0 0.0
    %624 = vmatprep.subr.mxu0 0.0
    %625 = vmatpush1.msra.mxu0 0.0
    %626 = vmatprep.subr.mxu0 0.0
    %627 = vmatpush1.msra.mxu0 0.0
    %628 = vmatprep.subr.mxu0 0.0
    %629 = vmatpush1.msra.mxu0 0.0
    %630 = vmatprep.subr.mxu0 0.0
    %631 = vmatpush1.msra.mxu0 0.0
    %632 = vmatprep.subr.mxu0 0.0
    %633 = vmatpush1.msra.mxu0 0.0
    %634 = vmatprep.subr.mxu0 0.0
    %635 = vmatpush1.msra.mxu0 0.0
    %636 = vmatprep.subr.mxu0 0.0
    %637 = vmatpush1.msra.mxu0 0.0
    %638 = vmatprep.subr.mxu0 0.0
    %639 = vmatpush1.msra.mxu0 0.0
    %640 = vmatprep.subr.mxu0 0.0
    %641 = vmatpush1.msra.mxu0 0.0
    %642 = vmatprep.subr.mxu0 0.0
    %643 = vmatpush1.msra.mxu0 0.0
    %644 = vmatprep.subr.mxu0 0.0
    %645 = vmatpush1.msra.mxu0 0.0
    %646 = vmatprep.subr.mxu0 0.0
    %647 = vmatpush1.msra.mxu0 0.0
    %648 = vmatprep.subr.mxu0 0.0
    %649 = vmatpush1.msra.mxu0 0.0
    %650 = vmatprep.subr.mxu0 0.0
    %651 = vmatpush1.msra.mxu0 0.0
    %652 = vmatprep.subr.mxu0 0.0
    %653 = vmatpush1.msra.mxu0 0.0
    %654 = vmatprep.subr.mxu0 0.0
    %655 = vmatpush1.msra.mxu0 0.0
    %656 = vmatprep.subr.mxu0 0.0
    %657 = vmatpush1.msra.mxu0 0.0
    %658 = vmatprep.subr.mxu0 0.0
    %659 = vmatpush1.msra.mxu0 0.0
    %660 = vmatprep.subr.mxu0 0.0
    %661 = vmatpush1.msra.mxu0 0.0
    %662 = vmatprep.subr.mxu0 0.0
    %663 = vmatpush1.msra.mxu0 0.0
    %664 = vmatprep.subr.mxu0 0.0
    %665 = vmatpush1.msra.mxu0 0.0
    %666 = vmatprep.subr.mxu0 0.0
    %667 = vmatpush1.msra.mxu0 0.0
    %668 = vmatprep.mubr.f32.mxu0 0.0
    %669 = vmatmul.mubr.f32.gmra.mrb[0].mxu0 %v602
    %v670 = vpop.f32.mrb[0].mxu0
    %v671 = vadd.f32 %v599, %v670
    %v672 = vpop.f32.mrb[0].mxu0
    %673 = vdwg.mxu0
    %v674 = vld [vmem:[#allocation14] sm:$0x1]
    %v675 = vld [vmem:[#allocation16] sm:$0x1]
    %v676 = vsel %vm350, %v671, 0.0
    %v677 = vrot.slane %v676, 4
    %v678 = vadd.f32 %v676, %v677
    %v679 = vrot.slane %v678, 2
    %v680 = vadd.f32 %v678, %v679
    %v681 = vrot.slane %v680, 1
    %v682 = vadd.f32 %v680, %v681
    %v683 = vmul.f32 %v682, %v434
    %v684 = vsub.f32 %v671, %v683
    %v685 = vmul.f32 %v684, %v684
    %v686 = vsel %vm350, %v685, 0.0
    %v687 = vrot.slane %v686, 4
    %v688 = vadd.f32 %v686, %v687
    %v689 = vrot.slane %v688, 2
    %v690 = vadd.f32 %v688, %v689
    %v691 = vrot.slane %v690, 1
    %v692 = vadd.f32 %v690, %v691
    %v693 = vmul.f32 %v692, %v434
    %v694 = vadd.f32 %v693, 1e-05
    %v695 = vrsqrt.pop %v694
    %v696 = vmul.f32 %v695, %v674
    %v697 = vlaneseq
    %v698 = vshrl.u32 %v697, 7
    %v699 = vsub.s32 0, %v698
    %v700 = vrot.slane %v696, %v699
    %v701 = vmul.f32 %v684, %v700
    %v703 = vlaneseq
    %v704 = vshrl.u32 %v703, 7
    %v705 = vsub.s32 0, %v704
    %v706 = vrot.slane %v675, %v705
    %v708 = vadd.f32 %v701, %v706
    %v709 = vmax.f32 %v708, 0.0
    %v710 = vld [vmem:[%s27] sm:$0xff]
    %v711 = vld [vmem:[%s27 + $0x8] sm:$0xff]
    %v712 = vld [vmem:[%s27 + $0x10] sm:$0xff]
    %v713 = vld [vmem:[%s27 + $0x18] sm:$0xff]
    %v714 = vld [vmem:[%s29] sm:$0x1]
    %v716 = vlaneseq
    %v717 = vshrl.u32 %v716, 7
    %v718 = vsub.s32 0, %v717
    %v719 = vrot.slane %v714, %v718
    %v722 = vsel %vm350, %v709, 0
    %724 = vmatprep.subr.mxu0 0.0
    %725 = vmatpush1.msra.mxu0 %v710
    %726 = vmatprep.subr.mxu0 0.0
    %727 = vmatpush1.msra.mxu0 %v711
    %728 = vmatprep.subr.mxu0 0.0
    %729 = vmatpush1.msra.mxu0 %v712
    %730 = vmatprep.subr.mxu0 0.0
    %731 = vmatpush1.msra.mxu0 %v713
    %732 = vmatprep.subr.mxu0 0.0
    %733 = vmatpush1.msra.mxu0 0.0
    %734 = vmatprep.subr.mxu0 0.0
    %735 = vmatpush1.msra.mxu0 0.0
    %736 = vmatprep.subr.mxu0 0.0
    %737 = vmatpush1.msra.mxu0 0.0
    %738 = vmatprep.subr.mxu0 0.0
    %739 = vmatpush1.msra.mxu0 0.0
    %740 = vmatprep.subr.mxu0 0.0
    %741 = vmatpush1.msra.mxu0 0.0
    %742 = vmatprep.subr.mxu0 0.0
    %743 = vmatpush1.msra.mxu0 0.0
    %744 = vmatprep.subr.mxu0 0.0
    %745 = vmatpush1.msra.mxu0 0.0
    %746 = vmatprep.subr.mxu0 0.0
    %747 = vmatpush1.msra.mxu0 0.0
    %748 = vmatprep.subr.mxu0 0.0
    %749 = vmatpush1.msra.mxu0 0.0
    %750 = vmatprep.subr.mxu0 0.0
    %751 = vmatpush1.msra.mxu0 0.0
    %752 = vmatprep.subr.mxu0 0.0
    %753 = vmatpush1.msra.mxu0 0.0
    %754 = vmatprep.subr.mxu0 0.0
    %755 = vmatpush1.msra.mxu0 0.0
    %756 = vmatprep.subr.mxu0 0.0
    %757 = vmatpush1.msra.mxu0 0.0
    %758 = vmatprep.subr.mxu0 0.0
    %759 = vmatpush1.msra.mxu0 0.0
    %760 = vmatprep.subr.mxu0 0.0
    %761 = vmatpush1.msra.mxu0 0.0
    %762 = vmatprep.subr.mxu0 0.0
    %763 = vmatpush1.msra.mxu0 0.0
    %764 = vmatprep.subr.mxu0 0.0
    %765 = vmatpush1.msra.mxu0 0.0
    %766 = vmatprep.subr.mxu0 0.0
    %767 = vmatpush1.msra.mxu0 0.0
    %768 = vmatprep.subr.mxu0 0.0
    %769 = vmatpush1.msra.mxu0 0.0
    %770 = vmatprep.subr.mxu0 0.0
    %771 = vmatpush1.msra.mxu0 0.0
    %772 = vmatprep.subr.mxu0 0.0
    %773 = vmatpush1.msra.mxu0 0.0
    %774 = vmatprep.subr.mxu0 0.0
    %775 = vmatpush1.msra.mxu0 0.0
    %776 = vmatprep.subr.mxu0 0.0
    %777 = vmatpush1.msra.mxu0 0.0
    %778 = vmatprep.subr.mxu0 0.0
    %779 = vmatpush1.msra.mxu0 0.0
    %780 = vmatprep.subr.mxu0 0.0
    %781 = vmatpush1.msra.mxu0 0.0
    %782 = vmatprep.subr.mxu0 0.0
    %783 = vmatpush1.msra.mxu0 0.0
    %784 = vmatprep.subr.mxu0 0.0
    %785 = vmatpush1.msra.mxu0 0.0
    %786 = vmatprep.subr.mxu0 0.0
    %787 = vmatpush1.msra.mxu0 0.0
    %788 = vmatprep.mubr.f32.mxu0 0.0
    %789 = vmatmul.mubr.f32.gmra.mrb[0].mxu0 %v722
    %v790 = vpop.f32.mrb[0].mxu0
    %v791 = vadd.f32 %v719, %v790
    %v792 = vpop.f32.mrb[0].mxu0
    %793 = vdwg.mxu0
    %v794 = vld [vmem:[%s31] sm:$0x1]
    %v795 = vld [vmem:[#allocation17] sm:$0x1]
    %v796 = vsel %vm350, %v791, 0.0
    %v797 = vrot.slane %v796, 4
    %v798 = vadd.f32 %v796, %v797
    %v799 = vrot.slane %v798, 2
    %v800 = vadd.f32 %v798, %v799
    %v801 = vrot.slane %v800, 1
    %v802 = vadd.f32 %v800, %v801
    %v803 = vmul.f32 %v802, %v434
    %v804 = vsub.f32 %v791, %v803
    %v805 = vmul.f32 %v804, %v804
    %v806 = vsel %vm350, %v805, 0.0
    %v807 = vrot.slane %v806, 4
    %v808 = vadd.f32 %v806, %v807
    %v809 = vrot.slane %v808, 2
    %v810 = vadd.f32 %v808, %v809
    %v811 = vrot.slane %v810, 1
    %v812 = vadd.f32 %v810, %v811
    %v813 = vmul.f32 %v812, %v434
    %v814 = vadd.f32 %v813, 1e-05
    %v815 = vrsqrt.pop %v814
    %v816 = vmul.f32 %v815, %v794
    %v817 = vlaneseq
    %v818 = vshrl.u32 %v817, 7
    %v819 = vsub.s32 0, %v818
    %v820 = vrot.slane %v816, %v819
    %v821 = vmul.f32 %v804, %v820
    %v823 = vlaneseq
    %v824 = vshrl.u32 %v823, 7
    %v825 = vsub.s32 0, %v824
    %v826 = vrot.slane %v795, %v825
    %v828 = vadd.f32 %v821, %v826
    %v829 = vld [vmem:[%s35] sm:$0xff]
    %v830 = vld [vmem:[%s35 + $0x8] sm:$0xff]
    %v831 = vld [vmem:[%s35 + $0x10] sm:$0xff]
    %v832 = vld [vmem:[%s35 + $0x18] sm:$0xff]
    %v833 = vld [vmem:[#allocation19] sm:$0x1]
    %v835 = vlaneseq
    %v836 = vshrl.u32 %v835, 7
    %v837 = vsub.s32 0, %v836
    %v838 = vrot.slane %v833, %v837
    %v841 = vsel %vm350, %v828, 0
    %843 = vmatprep.subr.mxu0 0.0
    %844 = vmatpush1.msra.mxu0 %v829
    %845 = vmatprep.subr.mxu0 0.0
    %846 = vmatpush1.msra.mxu0 %v830
    %847 = vmatprep.subr.mxu0 0.0
    %848 = vmatpush1.msra.mxu0 %v831
    %849 = vmatprep.subr.mxu0 0.0
    %850 = vmatpush1.msra.mxu0 %v832
    %851 = vmatprep.subr.mxu0 0.0
    %852 = vmatpush1.msra.mxu0 0.0
    %853 = vmatprep.subr.mxu0 0.0
    %854 = vmatpush1.msra.mxu0 0.0
    %855 = vmatprep.subr.mxu0 0.0
    %856 = vmatpush1.msra.mxu0 0.0
    %857 = vmatprep.subr.mxu0 0.0
    %858 = vmatpush1.msra.mxu0 0.0
    %859 = vmatprep.subr.mxu0 0.0
    %860 = vmatpush1.msra.mxu0 0.0
    %861 = vmatprep.subr.mxu0 0.0
    %862 = vmatpush1.msra.mxu0 0.0
    %863 = vmatprep.subr.mxu0 0.0
    %864 = vmatpush1.msra.mxu0 0.0
    %865 = vmatprep.subr.mxu0 0.0
    %866 = vmatpush1.msra.mxu0 0.0
    %867 = vmatprep.subr.mxu0 0.0
    %868 = vmatpush1.msra.mxu0 0.0
    %869 = vmatprep.subr.mxu0 0.0
    %870 = vmatpush1.msra.mxu0 0.0
    %871 = vmatprep.subr.mxu0 0.0
    %872 = vmatpush1.msra.mxu0 0.0
    %873 = vmatprep.subr.mxu0 0.0
    %874 = vmatpush1.msra.mxu0 0.0
    %875 = vmatprep.subr.mxu0 0.0
    %876 = vmatpush1.msra.mxu0 0.0
    %877 = vmatprep.subr.mxu0 0.0
    %878 = vmatpush1.msra.mxu0 0.0
    %879 = vmatprep.subr.mxu0 0.0
    %880 = vmatpush1.msra.mxu0 0.0
    %881 = vmatprep.subr.mxu0 0.0
    %882 = vmatpush1.msra.mxu0 0.0
    %883 = vmatprep.subr.mxu0 0.0
    %884 = vmatpush1.msra.mxu0 0.0
    %885 = vmatprep.subr.mxu0 0.0
    %886 = vmatpush1.msra.mxu0 0.0
    %887 = vmatprep.subr.mxu0 0.0
    %888 = vmatpush1.msra.mxu0 0.0
    %889 = vmatprep.subr.mxu0 0.0
    %890 = vmatpush1.msra.mxu0 0.0
    %891 = vmatprep.subr.mxu0 0.0
    %892 = vmatpush1.msra.mxu0 0.0
    %893 = vmatprep.subr.mxu0 0.0
    %894 = vmatpush1.msra.mxu0 0.0
    %895 = vmatprep.subr.mxu0 0.0
    %896 = vmatpush1.msra.mxu0 0.0
    %897 = vmatprep.subr.mxu0 0.0
    %898 = vmatpush1.msra.mxu0 0.0
    %899 = vmatprep.subr.mxu0 0.0
    %900 = vmatpush1.msra.mxu0 0.0
    %901 = vmatprep.subr.mxu0 0.0
    %902 = vmatpush1.msra.mxu0 0.0
    %903 = vmatprep.subr.mxu0 0.0
    %904 = vmatpush1.msra.mxu0 0.0
    %905 = vmatprep.subr.mxu0 0.0
    %906 = vmatpush1.msra.mxu0 0.0
    %907 = vmatprep.mubr.f32.mxu0 0.0
    %908 = vmatmul.mubr.f32.gmra.mrb[0].mxu0 %v841
    %v909 = vpop.f32.mrb[0].mxu0
    %v910 = vadd.f32 %v838, %v909
    %v911 = vpop.f32.mrb[0].mxu0
    %912 = vdwg.mxu0
    %v913 = vld [vmem:[#allocation20] sm:$0x1]
    %v914 = vld [vmem:[#allocation22] sm:$0x1]
    %v915 = vsel %vm350, %v910, 0.0
    %v916 = vrot.slane %v915, 4
    %v917 = vadd.f32 %v915, %v916
    %v918 = vrot.slane %v917, 2
    %v919 = vadd.f32 %v917, %v918
    %v920 = vrot.slane %v919, 1
    %v921 = vadd.f32 %v919, %v920
    %v922 = vmul.f32 %v921, %v434
    %v923 = vsub.f32 %v910, %v922
    %v924 = vmul.f32 %v923, %v923
    %v925 = vsel %vm350, %v924, 0.0
    %v926 = vrot.slane %v925, 4
    %v927 = vadd.f32 %v925, %v926
    %v928 = vrot.slane %v927, 2
    %v929 = vadd.f32 %v927, %v928
    %v930 = vrot.slane %v929, 1
    %v931 = vadd.f32 %v929, %v930
    %v932 = vmul.f32 %v931, %v434
    %v933 = vadd.f32 %v932, 1e-05
    %v934 = vrsqrt.pop %v933
    %v935 = vmul.f32 %v934, %v913
    %v936 = vlaneseq
    %v937 = vshrl.u32 %v936, 7
    %v938 = vsub.s32 0, %v937
    %v939 = vrot.slane %v935, %v938
    %v940 = vmul.f32 %v923, %v939
    %v942 = vlaneseq
    %v943 = vshrl.u32 %v942, 7
    %v944 = vsub.s32 0, %v943
    %v945 = vrot.slane %v914, %v944
    %v947 = vadd.f32 %v940, %v945
    %v948 = vld [vmem:[%s43] sm:$0xff]
    %v949 = vld [vmem:[%s43 + $0x8] sm:$0xff]
    %v950 = vld [vmem:[%s43 + $0x10] sm:$0xff]
    %v951 = vld [vmem:[%s43 + $0x18] sm:$0xff]
    %v952 = vld [vmem:[#allocation23] sm:$0x1]
    %v954 = vlaneseq
    %v955 = vshrl.u32 %v954, 7
    %v956 = vsub.s32 0, %v955
    %v957 = vrot.slane %v952, %v956
    %v960 = vsel %vm350, %v947, 0
    %962 = vmatprep.subr.mxu0 0.0
    %963 = vmatpush1.msra.mxu0 %v948
    %964 = vmatprep.subr.mxu0 0.0
    %965 = vmatpush1.msra.mxu0 %v949
    %966 = vmatprep.subr.mxu0 0.0
    %967 = vmatpush1.msra.mxu0 %v950
    %968 = vmatprep.subr.mxu0 0.0
    %969 = vmatpush1.msra.mxu0 %v951
    %970 = vmatprep.subr.mxu0 0.0
    %971 = vmatpush1.msra.mxu0 0.0
    %972 = vmatprep.subr.mxu0 0.0
    %973 = vmatpush1.msra.mxu0 0.0
    %974 = vmatprep.subr.mxu0 0.0
    %975 = vmatpush1.msra.mxu0 0.0
    %976 = vmatprep.subr.mxu0 0.0
    %977 = vmatpush1.msra.mxu0 0.0
    %978 = vmatprep.subr.mxu0 0.0
    %979 = vmatpush1.msra.mxu0 0.0
    %980 = vmatprep.subr.mxu0 0.0
    %981 = vmatpush1.msra.mxu0 0.0
    %982 = vmatprep.subr.mxu0 0.0
    %983 = vmatpush1.msra.mxu0 0.0
    %984 = vmatprep.subr.mxu0 0.0
    %985 = vmatpush1.msra.mxu0 0.0
    %986 = vmatprep.subr.mxu0 0.0
    %987 = vmatpush1.msra.mxu0 0.0
    %988 = vmatprep.subr.mxu0 0.0
    %989 = vmatpush1.msra.mxu0 0.0
    %990 = vmatprep.subr.mxu0 0.0
    %991 = vmatpush1.msra.mxu0 0.0
    %992 = vmatprep.subr.mxu0 0.0
    %993 = vmatpush1.msra.mxu0 0.0
    %994 = vmatprep.subr.mxu0 0.0
    %995 = vmatpush1.msra.mxu0 0.0
    %996 = vmatprep.subr.mxu0 0.0
    %997 = vmatpush1.msra.mxu0 0.0
    %998 = vmatprep.subr.mxu0 0.0
    %999 = vmatpush1.msra.mxu0 0.0
    %1000 = vmatprep.subr.mxu0 0.0
    %1001 = vmatpush1.msra.mxu0 0.0
    %1002 = vmatprep.subr.mxu0 0.0
    %1003 = vmatpush1.msra.mxu0 0.0
    %1004 = vmatprep.subr.mxu0 0.0
    %1005 = vmatpush1.msra.mxu0 0.0
    %1006 = vmatprep.subr.mxu0 0.0
    %1007 = vmatpush1.msra.mxu0 0.0
    %1008 = vmatprep.subr.mxu0 0.0
    %1009 = vmatpush1.msra.mxu0 0.0
    %1010 = vmatprep.subr.mxu0 0.0
    %1011 = vmatpush1.msra.mxu0 0.0
    %1012 = vmatprep.subr.mxu0 0.0
    %1013 = vmatpush1.msra.mxu0 0.0
    %1014 = vmatprep.subr.mxu0 0.0
    %1015 = vmatpush1.msra.mxu0 0.0
    %1016 = vmatprep.subr.mxu0 0.0
    %1017 = vmatpush1.msra.mxu0 0.0
    %1018 = vmatprep.subr.mxu0 0.0
    %1019 = vmatpush1.msra.mxu0 0.0
    %1020 = vmatprep.subr.mxu0 0.0
    %1021 = vmatpush1.msra.mxu0 0.0
    %1022 = vmatprep.subr.mxu0 0.0
    %1023 = vmatpush1.msra.mxu0 0.0
    %1024 = vmatprep.subr.mxu0 0.0
    %1025 = vmatpush1.msra.mxu0 0.0
    %1026 = vmatprep.mubr.f32.mxu0 0.0
    %1027 = vmatmul.mubr.f32.gmra.mrb[0].mxu0 %v960
    %v1028 = vpop.f32.mrb[0].mxu0
    %v1029 = vadd.f32 %v957, %v1028
    %v1030 = vpop.f32.mrb[0].mxu0
    %1031 = vdwg.mxu0
    %v1032 = vld [vmem:[%s47] sm:$0x1]
    %v1033 = vld [vmem:[%s49] sm:$0x1]
    %vm1034 = vcmask 130048
    %v1035 = vsel %vm1034, %v1029, 0.0
    %v1036 = vrot.slane %v1035, 4
    %v1037 = vadd.f32 %v1035, %v1036
    %v1038 = vrot.slane %v1037, 2
    %v1039 = vadd.f32 %v1037, %v1038
    %v1040 = vrot.slane %v1039, 1
    %v1041 = vadd.f32 %v1039, %v1040
    %v1042 = vmul.f32 %v1041, %v434
    %v1043 = vsub.f32 %v1029, %v1042
    %v1044 = vmul.f32 %v1043, %v1043
    %v1045 = vsel %vm1034, %v1044, 0.0
    %v1046 = vrot.slane %v1045, 4
    %v1047 = vadd.f32 %v1045, %v1046
    %v1048 = vrot.slane %v1047, 2
    %v1049 = vadd.f32 %v1047, %v1048
    %v1050 = vrot.slane %v1049, 1
    %v1051 = vadd.f32 %v1049, %v1050
    %v1052 = vmul.f32 %v1051, %v434
    %v1053 = vadd.f32 %v1052, 1e-05
    %v1054 = vrsqrt.pop %v1053
    %v1055 = vmul.f32 %v1054, %v1032
    %v1056 = vlaneseq
    %v1057 = vshrl.u32 %v1056, 7
    %v1058 = vsub.s32 0, %v1057
    %v1059 = vrot.slane %v1055, %v1058
    %v1060 = vmul.f32 %v1043, %v1059
    %v1062 = vlaneseq
    %v1063 = vshrl.u32 %v1062, 7
    %v1064 = vsub.s32 0, %v1063
    %v1065 = vrot.slane %v1033, %v1064
    %v1067 = vadd.f32 %v1060, %v1065
    %v1068 = vld [vmem:[#allocation25] sm:$0xff]
    %v1069 = vld [vmem:[#allocation25 + $0x8] sm:$0xff]
    %v1070 = vld [vmem:[%s53] sm:$0x1]
    %v1072 = vlaneseq
    %v1073 = vshrl.u32 %v1072, 7
    %v1074 = vsub.s32 0, %v1073
    %v1075 = vrot.slane %v1070, %v1074
    %v1078 = vsel %vm1034, %v1067, 0
    %1080 = vmatprep.subr.mxu0 0.0
    %1081 = vmatpush1.msra.mxu0 %v1068
    %1082 = vmatprep.subr.mxu0 0.0
    %1083 = vmatpush1.msra.mxu0 %v1069
    %1084 = vmatprep.subr.mxu0 0.0
    %1085 = vmatpush1.msra.mxu0 0.0
    %1086 = vmatprep.subr.mxu0 0.0
    %1087 = vmatpush1.msra.mxu0 0.0
    %1088 = vmatprep.subr.mxu0 0.0
    %1089 = vmatpush1.msra.mxu0 0.0
    %1090 = vmatprep.subr.mxu0 0.0
    %1091 = vmatpush1.msra.mxu0 0.0
    %1092 = vmatprep.subr.mxu0 0.0
    %1093 = vmatpush1.msra.mxu0 0.0
    %1094 = vmatprep.subr.mxu0 0.0
    %1095 = vmatpush1.msra.mxu0 0.0
    %1096 = vmatprep.subr.mxu0 0.0
    %1097 = vmatpush1.msra.mxu0 0.0
    %1098 = vmatprep.subr.mxu0 0.0
    %1099 = vmatpush1.msra.mxu0 0.0
    %1100 = vmatprep.subr.mxu0 0.0
    %1101 = vmatpush1.msra.mxu0 0.0
    %1102 = vmatprep.subr.mxu0 0.0
    %1103 = vmatpush1.msra.mxu0 0.0
    %1104 = vmatprep.subr.mxu0 0.0
    %1105 = vmatpush1.msra.mxu0 0.0
    %1106 = vmatprep.subr.mxu0 0.0
    %1107 = vmatpush1.msra.mxu0 0.0
    %1108 = vmatprep.subr.mxu0 0.0
    %1109 = vmatpush1.msra.mxu0 0.0
    %1110 = vmatprep.subr.mxu0 0.0
    %1111 = vmatpush1.msra.mxu0 0.0
    %1112 = vmatprep.subr.mxu0 0.0
    %1113 = vmatpush1.msra.mxu0 0.0
    %1114 = vmatprep.subr.mxu0 0.0
    %1115 = vmatpush1.msra.mxu0 0.0
    %1116 = vmatprep.subr.mxu0 0.0
    %1117 = vmatpush1.msra.mxu0 0.0
    %1118 = vmatprep.subr.mxu0 0.0
    %1119 = vmatpush1.msra.mxu0 0.0
    %1120 = vmatprep.subr.mxu0 0.0
    %1121 = vmatpush1.msra.mxu0 0.0
    %1122 = vmatprep.subr.mxu0 0.0
    %1123 = vmatpush1.msra.mxu0 0.0
    %1124 = vmatprep.subr.mxu0 0.0
    %1125 = vmatpush1.msra.mxu0 0.0
    %1126 = vmatprep.subr.mxu0 0.0
    %1127 = vmatpush1.msra.mxu0 0.0
    %1128 = vmatprep.subr.mxu0 0.0
    %1129 = vmatpush1.msra.mxu0 0.0
    %1130 = vmatprep.subr.mxu0 0.0
    %1131 = vmatpush1.msra.mxu0 0.0
    %1132 = vmatprep.subr.mxu0 0.0
    %1133 = vmatpush1.msra.mxu0 0.0
    %1134 = vmatprep.subr.mxu0 0.0
    %1135 = vmatpush1.msra.mxu0 0.0
    %1136 = vmatprep.subr.mxu0 0.0
    %1137 = vmatpush1.msra.mxu0 0.0
    %1138 = vmatprep.subr.mxu0 0.0
    %1139 = vmatpush1.msra.mxu0 0.0
    %1140 = vmatprep.subr.mxu0 0.0
    %1141 = vmatpush1.msra.mxu0 0.0
    %1142 = vmatprep.subr.mxu0 0.0
    %1143 = vmatpush1.msra.mxu0 0.0
    %1144 = vmatprep.mubr.f32.mxu0 0.0
    %1145 = vmatmul.mubr.f32.gmra.mrb[0].mxu0 %v1078
    %v1146 = vpop.f32.mrb[0].mxu0
    %v1147 = vadd.f32 %v1075, %v1146
    %v1148 = vpop.f32.mrb[0].mxu0
    %1149 = vdwg.mxu0
    %v1150 = vld [vmem:[%s55] sm:$0x1]
    %v1151 = vld [vmem:[%s57] sm:$0x1]
    %v1152 = vsel %vm350, %v1147, 0.0
    %v1153 = vrot.slane %v1152, 4
    %v1154 = vadd.f32 %v1152, %v1153
    %v1155 = vrot.slane %v1154, 2
    %v1156 = vadd.f32 %v1154, %v1155
    %v1157 = vrot.slane %v1156, 1
    %v1158 = vadd.f32 %v1156, %v1157
    %v1159 = vmul.f32 %v1158, %v434
    %v1160 = vsub.f32 %v1147, %v1159
    %v1161 = vmul.f32 %v1160, %v1160
    %v1162 = vsel %vm350, %v1161, 0.0
    %v1163 = vrot.slane %v1162, 4
    %v1164 = vadd.f32 %v1162, %v1163
    %v1165 = vrot.slane %v1164, 2
    %v1166 = vadd.f32 %v1164, %v1165
    %v1167 = vrot.slane %v1166, 1
    %v1168 = vadd.f32 %v1166, %v1167
    %v1169 = vmul.f32 %v1168, %v434
    %v1170 = vadd.f32 %v1169, 1e-05
    %v1171 = vrsqrt.pop %v1170
    %v1172 = vmul.f32 %v1171, %v1150
    %v1173 = vlaneseq
    %v1174 = vshrl.u32 %v1173, 7
    %v1175 = vsub.s32 0, %v1174
    %v1176 = vrot.slane %v1172, %v1175
    %v1177 = vmul.f32 %v1160, %v1176
    %v1179 = vlaneseq
    %v1180 = vshrl.u32 %v1179, 7
    %v1181 = vsub.s32 0, %v1180
    %v1182 = vrot.slane %v1151, %v1181
    %v1184 = vadd.f32 %v1177, %v1182
    %v1185 = vmax.f32 %v1184, 0.0
    %v1186 = vld [vmem:[%s59] sm:$0xff]
    %v1187 = vld [vmem:[%s59 + $0x8] sm:$0xff]
    %v1188 = vld [vmem:[%s59 + $0x10] sm:$0xff]
    %v1189 = vld [vmem:[%s59 + $0x18] sm:$0xff]
    %v1190 = vld [vmem:[%s61] sm:$0x1]
    %v1192 = vlaneseq
    %v1193 = vshrl.u32 %v1192, 7
    %v1194 = vsub.s32 0, %v1193
    %v1195 = vrot.slane %v1190, %v1194
    %v1198 = vsel %vm350, %v1185, 0
    %1200 = vmatprep.subr.mxu0 0.0
    %1201 = vmatpush1.msra.mxu0 %v1186
    %1202 = vmatprep.subr.mxu0 0.0
    %1203 = vmatpush1.msra.mxu0 %v1187
    %1204 = vmatprep.subr.mxu0 0.0
    %1205 = vmatpush1.msra.mxu0 %v1188
    %1206 = vmatprep.subr.mxu0 0.0
    %1207 = vmatpush1.msra.mxu0 %v1189
    %1208 = vmatprep.subr.mxu0 0.0
    %1209 = vmatpush1.msra.mxu0 0.0
    %1210 = vmatprep.subr.mxu0 0.0
    %1211 = vmatpush1.msra.mxu0 0.0
    %1212 = vmatprep.subr.mxu0 0.0
    %1213 = vmatpush1.msra.mxu0 0.0
    %1214 = vmatprep.subr.mxu0 0.0
    %1215 = vmatpush1.msra.mxu0 0.0
    %1216 = vmatprep.subr.mxu0 0.0
    %1217 = vmatpush1.msra.mxu0 0.0
    %1218 = vmatprep.subr.mxu0 0.0
    %1219 = vmatpush1.msra.mxu0 0.0
    %1220 = vmatprep.subr.mxu0 0.0
    %1221 = vmatpush1.msra.mxu0 0.0
    %1222 = vmatprep.subr.mxu0 0.0
    %1223 = vmatpush1.msra.mxu0 0.0
    %1224 = vmatprep.subr.mxu0 0.0
    %1225 = vmatpush1.msra.mxu0 0.0
    %1226 = vmatprep.subr.mxu0 0.0
    %1227 = vmatpush1.msra.mxu0 0.0
    %1228 = vmatprep.subr.mxu0 0.0
    %1229 = vmatpush1.msra.mxu0 0.0
    %1230 = vmatprep.subr.mxu0 0.0
    %1231 = vmatpush1.msra.mxu0 0.0
    %1232 = vmatprep.subr.mxu0 0.0
    %1233 = vmatpush1.msra.mxu0 0.0
    %1234 = vmatprep.subr.mxu0 0.0
    %1235 = vmatpush1.msra.mxu0 0.0
    %1236 = vmatprep.subr.mxu0 0.0
    %1237 = vmatpush1.msra.mxu0 0.0
    %1238 = vmatprep.subr.mxu0 0.0
    %1239 = vmatpush1.msra.mxu0 0.0
    %1240 = vmatprep.subr.mxu0 0.0
    %1241 = vmatpush1.msra.mxu0 0.0
    %1242 = vmatprep.subr.mxu0 0.0
    %1243 = vmatpush1.msra.mxu0 0.0
    %1244 = vmatprep.subr.mxu0 0.0
    %1245 = vmatpush1.msra.mxu0 0.0
    %1246 = vmatprep.subr.mxu0 0.0
    %1247 = vmatpush1.msra.mxu0 0.0
    %1248 = vmatprep.subr.mxu0 0.0
    %1249 = vmatpush1.msra.mxu0 0.0
    %1250 = vmatprep.subr.mxu0 0.0
    %1251 = vmatpush1.msra.mxu0 0.0
    %1252 = vmatprep.subr.mxu0 0.0
    %1253 = vmatpush1.msra.mxu0 0.0
    %1254 = vmatprep.subr.mxu0 0.0
    %1255 = vmatpush1.msra.mxu0 0.0
    %1256 = vmatprep.subr.mxu0 0.0
    %1257 = vmatpush1.msra.mxu0 0.0
    %1258 = vmatprep.subr.mxu0 0.0
    %1259 = vmatpush1.msra.mxu0 0.0
    %1260 = vmatprep.subr.mxu0 0.0
    %1261 = vmatpush1.msra.mxu0 0.0
    %1262 = vmatprep.subr.mxu0 0.0
    %1263 = vmatpush1.msra.mxu0 0.0
    %1264 = vmatprep.mubr.f32.mxu0 0.0
    %1265 = vmatmul.mubr.f32.gmra.mrb[0].mxu0 %v1198
    %v1266 = vpop.f32.mrb[0].mxu0
    %v1267 = vadd.f32 %v1195, %v1266
    %v1268 = vpop.f32.mrb[0].mxu0
    %1269 = vdwg.mxu0
    %v1270 = vld [vmem:[%s63] sm:$0x1]
    %v1271 = vld [vmem:[%s65] sm:$0x1]
    %v1272 = vsel %vm426, %v1267, 0.0
    %v1273 = vrot.slane %v1272, 4
    %v1274 = vadd.f32 %v1272, %v1273
    %v1275 = vrot.slane %v1274, 2
    %v1276 = vadd.f32 %v1274, %v1275
    %v1277 = vrot.slane %v1276, 1
    %v1278 = vadd.f32 %v1276, %v1277
    %v1279 = vmul.f32 %v1278, %v434
    %v1280 = vsub.f32 %v1267, %v1279
    %v1281 = vmul.f32 %v1280, %v1280
    %v1282 = vsel %vm426, %v1281, 0.0
    %v1283 = vrot.slane %v1282, 4
    %v1284 = vadd.f32 %v1282, %v1283
    %v1285 = vrot.slane %v1284, 2
    %v1286 = vadd.f32 %v1284, %v1285
    %v1287 = vrot.slane %v1286, 1
    %v1288 = vadd.f32 %v1286, %v1287
    %v1289 = vmul.f32 %v1288, %v434
    %v1290 = vadd.f32 %v1289, 1e-05
    %v1291 = vrsqrt.pop %v1290
    %v1292 = vmul.f32 %v1291, %v1270
    %v1293 = vlaneseq
    %v1294 = vshrl.u32 %v1293, 7
    %v1295 = vsub.s32 0, %v1294
    %v1296 = vrot.slane %v1292, %v1295
    %v1297 = vmul.f32 %v1280, %v1296
    %v1299 = vlaneseq
    %v1300 = vshrl.u32 %v1299, 7
    %v1301 = vsub.s32 0, %v1300
    %v1302 = vrot.slane %v1271, %v1301
    %v1304 = vadd.f32 %v1297, %v1302
    %v1305 = vmax.f32 %v1304, 0.0
    %v1306 = vld [vmem:[%s67] sm:$0xff]
    %v1307 = vld [vmem:[%s67 + $0x8] sm:$0xff]
    %v1308 = vld [vmem:[%s67 + $0x10] sm:$0xff]
    %v1309 = vld [vmem:[%s67 + $0x18] sm:$0xff]
    %v1310 = vld [vmem:[%s67 + $0x20] sm:$0xff]
    %v1311 = vld [vmem:[%s67 + $0x28] sm:$0xff]
    %v1312 = vld [vmem:[%s67 + $0x30] sm:$0xff]
    %v1313 = vld [vmem:[%s67 + $0x38] sm:$0xff]
    %v1314 = vld [vmem:[%s69] sm:$0x1]
    %v1316 = vlaneseq
    %v1317 = vshrl.u32 %v1316, 7
    %v1318 = vsub.s32 0, %v1317
    %v1319 = vrot.slane %v1314, %v1318
    %v1322 = vsel %vm426, %v1305, 0
    %1324 = vmatprep.subr.mxu0 0.0
    %1325 = vmatpush1.msra.mxu0 %v1306
    %1326 = vmatprep.subr.mxu0 0.0
    %1327 = vmatpush1.msra.mxu0 %v1307
    %1328 = vmatprep.subr.mxu0 0.0
    %1329 = vmatpush1.msra.mxu0 %v1308
    %1330 = vmatprep.subr.mxu0 0.0
    %1331 = vmatpush1.msra.mxu0 %v1309
    %1332 = vmatprep.subr.mxu0 0.0
    %1333 = vmatpush1.msra.mxu0 %v1310
    %1334 = vmatprep.subr.mxu0 0.0
    %1335 = vmatpush1.msra.mxu0 %v1311
    %1336 = vmatprep.subr.mxu0 0.0
    %1337 = vmatpush1.msra.mxu0 %v1312
    %1338 = vmatprep.subr.mxu0 0.0
    %1339 = vmatpush1.msra.mxu0 %v1313
    %1340 = vmatprep.subr.mxu0 0.0
    %1341 = vmatpush1.msra.mxu0 0.0
    %1342 = vmatprep.subr.mxu0 0.0
    %1343 = vmatpush1.msra.mxu0 0.0
    %1344 = vmatprep.subr.mxu0 0.0
    %1345 = vmatpush1.msra.mxu0 0.0
    %1346 = vmatprep.subr.mxu0 0.0
    %1347 = vmatpush1.msra.mxu0 0.0
    %1348 = vmatprep.subr.mxu0 0.0
    %1349 = vmatpush1.msra.mxu0 0.0
    %1350 = vmatprep.subr.mxu0 0.0
    %1351 = vmatpush1.msra.mxu0 0.0
    %1352 = vmatprep.subr.mxu0 0.0
    %1353 = vmatpush1.msra.mxu0 0.0
    %1354 = vmatprep.subr.mxu0 0.0
    %1355 = vmatpush1.msra.mxu0 0.0
    %1356 = vmatprep.subr.mxu0 0.0
    %1357 = vmatpush1.msra.mxu0 0.0
    %1358 = vmatprep.subr.mxu0 0.0
    %1359 = vmatpush1.msra.mxu0 0.0
    %1360 = vmatprep.subr.mxu0 0.0
    %1361 = vmatpush1.msra.mxu0 0.0
    %1362 = vmatprep.subr.mxu0 0.0
    %1363 = vmatpush1.msra.mxu0 0.0
    %1364 = vmatprep.subr.mxu0 0.0
    %1365 = vmatpush1.msra.mxu0 0.0
    %1366 = vmatprep.subr.mxu0 0.0
    %1367 = vmatpush1.msra.mxu0 0.0
    %1368 = vmatprep.subr.mxu0 0.0
    %1369 = vmatpush1.msra.mxu0 0.0
    %1370 = vmatprep.subr.mxu0 0.0
    %1371 = vmatpush1.msra.mxu0 0.0
    %1372 = vmatprep.subr.mxu0 0.0
    %1373 = vmatpush1.msra.mxu0 0.0
    %1374 = vmatprep.subr.mxu0 0.0
    %1375 = vmatpush1.msra.mxu0 0.0
    %1376 = vmatprep.subr.mxu0 0.0
    %1377 = vmatpush1.msra.mxu0 0.0
    %1378 = vmatprep.subr.mxu0 0.0
    %1379 = vmatpush1.msra.mxu0 0.0
    %1380 = vmatprep.subr.mxu0 0.0
    %1381 = vmatpush1.msra.mxu0 0.0
    %1382 = vmatprep.subr.mxu0 0.0
    %1383 = vmatpush1.msra.mxu0 0.0
    %1384 = vmatprep.subr.mxu0 0.0
    %1385 = vmatpush1.msra.mxu0 0.0
    %1386 = vmatprep.subr.mxu0 0.0
    %1387 = vmatpush1.msra.mxu0 0.0
    %1388 = vmatprep.mubr.f32.mxu0 0.0
    %1389 = vmatmul.mubr.f32.gmra.mrb[0].mxu0 %v1322
    %v1390 = vpop.f32.mrb[0].mxu0
    %v1391 = vadd.f32 %v1319, %v1390
    %v1392 = vpop.f32.mrb[0].mxu0
    %1393 = vdwg.mxu0
    %v1394 = vld [vmem:[%s71] sm:$0x1]
    %v1395 = vld [vmem:[%s73] sm:$0x1]
    %v1396 = vsel %vm426, %v1391, 0.0
    %v1397 = vrot.slane %v1396, 4
    %v1398 = vadd.f32 %v1396, %v1397
    %v1399 = vrot.slane %v1398, 2
    %v1400 = vadd.f32 %v1398, %v1399
    %v1401 = vrot.slane %v1400, 1
    %v1402 = vadd.f32 %v1400, %v1401
    %v1403 = vmul.f32 %v1402, %v434
    %v1404 = vsub.f32 %v1391, %v1403
    %v1405 = vmul.f32 %v1404, %v1404
    %v1406 = vsel %vm426, %v1405, 0.0
    %v1407 = vrot.slane %v1406, 4
    %v1408 = vadd.f32 %v1406, %v1407
    %v1409 = vrot.slane %v1408, 2
    %v1410 = vadd.f32 %v1408, %v1409
    %v1411 = vrot.slane %v1410, 1
    %v1412 = vadd.f32 %v1410, %v1411
    %v1413 = vmul.f32 %v1412, %v434
    %v1414 = vadd.f32 %v1413, 1e-05
    %v1415 = vrsqrt.pop %v1414
    %v1416 = vmul.f32 %v1415, %v1394
    %v1417 = vlaneseq
    %v1418 = vshrl.u32 %v1417, 7
    %v1419 = vsub.s32 0, %v1418
    %v1420 = vrot.slane %v1416, %v1419
    %v1421 = vmul.f32 %v1404, %v1420
    %v1423 = vlaneseq
    %v1424 = vshrl.u32 %v1423, 7
    %v1425 = vsub.s32 0, %v1424
    %v1426 = vrot.slane %v1395, %v1425
    %v1428 = vadd.f32 %v1421, %v1426
    %v1429 = vmax.f32 %v1428, 0.0
    %v1430 = vld [vmem:[%s75] sm:$0xff]
    %v1431 = vld [vmem:[%s75 + $0x8] sm:$0xff]
    %v1432 = vld [vmem:[%s75 + $0x10] sm:$0xff]
    %v1433 = vld [vmem:[%s75 + $0x18] sm:$0xff]
    %v1434 = vld [vmem:[%s75 + $0x20] sm:$0xff]
    %v1435 = vld [vmem:[%s75 + $0x28] sm:$0xff]
    %v1436 = vld [vmem:[%s75 + $0x30] sm:$0xff]
    %v1437 = vld [vmem:[%s75 + $0x38] sm:$0xff]
    %v1438 = vld [vmem:[%s77] sm:$0x1]
    %v1440 = vlaneseq
    %v1441 = vshrl.u32 %v1440, 7
    %v1442 = vsub.s32 0, %v1441
    %v1443 = vrot.slane %v1438, %v1442
    %v1446 = vsel %vm426, %v1429, 0
    %1448 = vmatprep.subr.mxu0 0.0
    %1449 = vmatpush1.msra.mxu0 %v1430
    %1450 = vmatprep.subr.mxu0 0.0
    %1451 = vmatpush1.msra.mxu0 %v1431
    %1452 = vmatprep.subr.mxu0 0.0
    %1453 = vmatpush1.msra.mxu0 %v1432
    %1454 = vmatprep.subr.mxu0 0.0
    %1455 = vmatpush1.msra.mxu0 %v1433
    %1456 = vmatprep.subr.mxu0 0.0
    %1457 = vmatpush1.msra.mxu0 %v1434
    %1458 = vmatprep.subr.mxu0 0.0
    %1459 = vmatpush1.msra.mxu0 %v1435
    %1460 = vmatprep.subr.mxu0 0.0
    %1461 = vmatpush1.msra.mxu0 %v1436
    %1462 = vmatprep.subr.mxu0 0.0
    %1463 = vmatpush1.msra.mxu0 %v1437
    %1464 = vmatprep.subr.mxu0 0.0
    %1465 = vmatpush1.msra.mxu0 0.0
    %1466 = vmatprep.subr.mxu0 0.0
    %1467 = vmatpush1.msra.mxu0 0.0
    %1468 = vmatprep.subr.mxu0 0.0
    %1469 = vmatpush1.msra.mxu0 0.0
    %1470 = vmatprep.subr.mxu0 0.0
    %1471 = vmatpush1.msra.mxu0 0.0
    %1472 = vmatprep.subr.mxu0 0.0
    %1473 = vmatpush1.msra.mxu0 0.0
    %1474 = vmatprep.subr.mxu0 0.0
    %1475 = vmatpush1.msra.mxu0 0.0
    %1476 = vmatprep.subr.mxu0 0.0
    %1477 = vmatpush1.msra.mxu0 0.0
    %1478 = vmatprep.subr.mxu0 0.0
    %1479 = vmatpush1.msra.mxu0 0.0
    %1480 = vmatprep.subr.mxu0 0.0
    %1481 = vmatpush1.msra.mxu0 0.0
    %1482 = vmatprep.subr.mxu0 0.0
    %1483 = vmatpush1.msra.mxu0 0.0
    %1484 = vmatprep.subr.mxu0 0.0
    %1485 = vmatpush1.msra.mxu0 0.0
    %1486 = vmatprep.subr.mxu0 0.0
    %1487 = vmatpush1.msra.mxu0 0.0
    %1488 = vmatprep.subr.mxu0 0.0
    %1489 = vmatpush1.msra.mxu0 0.0
    %1490 = vmatprep.subr.mxu0 0.0
    %1491 = vmatpush1.msra.mxu0 0.0
    %1492 = vmatprep.subr.mxu0 0.0
    %1493 = vmatpush1.msra.mxu0 0.0
    %1494 = vmatprep.subr.mxu0 0.0
    %1495 = vmatpush1.msra.mxu0 0.0
    %1496 = vmatprep.subr.mxu0 0.0
    %1497 = vmatpush1.msra.mxu0 0.0
    %1498 = vmatprep.subr.mxu0 0.0
    %1499 = vmatpush1.msra.mxu0 0.0
    %1500 = vmatprep.subr.mxu0 0.0
    %1501 = vmatpush1.msra.mxu0 0.0
    %1502 = vmatprep.subr.mxu0 0.0
    %1503 = vmatpush1.msra.mxu0 0.0
    %1504 = vmatprep.subr.mxu0 0.0
    %1505 = vmatpush1.msra.mxu0 0.0
    %1506 = vmatprep.subr.mxu0 0.0
    %1507 = vmatpush1.msra.mxu0 0.0
    %1508 = vmatprep.subr.mxu0 0.0
    %1509 = vmatpush1.msra.mxu0 0.0
    %1510 = vmatprep.subr.mxu0 0.0
    %1511 = vmatpush1.msra.mxu0 0.0
    %1512 = vmatprep.mubr.f32.mxu0 0.0
    %1513 = vmatmul.mubr.f32.gmra.mrb[0].mxu0 %v1446
    %v1514 = vpop.f32.mrb[0].mxu0
    %v1515 = vadd.f32 %v1443, %v1514
    %v1516 = vpop.f32.mrb[0].mxu0
    %1517 = vdwg.mxu0
    %v1518 = vmax.f32 %v1515, 0.0
    %1519 = vrot.lane.b32.xlu0 %v1067, 32
    %v1520 = vpop.permute.xlu0 %1519
    %v1522 = vsel %vm350, %v1518, %v1520
    %vm1523 = vcmask 392192
    %v1524 = vsel %vm1523, %v1522, 0.0
    %1525 = vst [vmem:[#allocation26] sm:$0xff] %v1524
    // Predicated region
    $region218: #{tpu_custom_call.1} parent=1 // pred_check
      _
    $region219: #{tpu_custom_call.1} parent=1 // pred_check_branch
      %1527 = sbr.rel (0) target = $region221
    $region220: #{tpu_custom_call.1} parent=1 // pred_region
      %s1529 = ssub.s32 128, 128
      %1530 = vsyncadd [#allocation4], %s1529
      %s1532 = sshll.u32 [#allocation26], 4
      %s1533 = int_to_ptr.vmem [resolvable:$true] %s1532
      %1535 = dma.vmem_to_hbm [thread:$0]  %s1533, 128, %s79, [#allocation4]
    $region221: #{tpu_custom_call.1} parent=1 // pred_fallthru
      _
    // Predicated region
    $region222: #{tpu_custom_call.1} parent=1 // pred_check
      _
    $region223: #{tpu_custom_call.1} parent=1 // pred_check_branch
      %1537 = sbr.rel (0) target = $region225
    $region224: #{tpu_custom_call.1} parent=1 // pred_region
      %1538 = dma.done [#allocation4], 128
    $region225: #{tpu_custom_call.1} parent=1 // pred_fallthru
      _
    %1539 = vsyncpa [#allocation3], 1
    %1540 = vsyncpa [#allocation6], 1
    %1541 = vsyncpa [#allocation9], 1
    %1542 = vsyncpa [#allocation12], 1
    %1543 = vsyncpa [#allocation15], 1
    %1544 = vsyncpa [#allocation18], 1
    %1545 = vsyncpa [#allocation21], 1
    %1546 = vsyncpa [#allocation24], 1
    %1547 = vsyncpa [#allocation4], 1

</llo_original>
